<compile_context>
chip_gen: v5e
topology: v5e:2x2
jax: 0.10.0
libtpu: 0.0.40
codegen_flags: <defaults>
</compile_context>

<pallas_src>
import jax
import jax.numpy as jnp
from jax.experimental import pallas as pl
from jax.experimental.pallas import tpu as pltpu

# ---------------- model dimensions ----------------
LATENT_DIM = 32      # generator.latent_dim
PARS_DIM = 8         # conditioning parameters
HIDDEN_DIM = 64
OUT_DIM = 128        # generated WDN state dimension

# ---------------- padded / augmented dimensions ----------------
IN_PAD = 128                       # [z(32) | pars(8) | 1 | zeros(87)]
HID_PAD = 128                      # [hidden(64) | 1 | zeros(63)]
ONES_IN_IDX = LATENT_DIM + PARS_DIM   # column 40 of the augmented input == 1
ONES_HID_IDX = HIDDEN_DIM             # column 64 of h1/h2 == 1 (bias carrier)

LEAKY_SLOPE = 0.2
TILE_B = 256         # batch tile: fills the 256-row MXU on v6e/v7x


def _generator_kernel(x_ref, w1_ref, w2_ref, w3_ref, out_ref):
    """Fused conditional-generator MLP on one (TILE_B, *) batch tile.

    x_ref : (TILE_B, IN_PAD)   bf16  -- [z | pars | 1 | 0-pad]
    w1_ref: (IN_PAD, HID_PAD)  bf16  -- [W1z; W1p; b1; 0] with 1-propagation col
    w2_ref: (HID_PAD, HID_PAD) bf16  -- [W2; b2; 0]       with 1-propagation col
    w3_ref: (HID_PAD, OUT_DIM) bf16  -- [W3; b3; 0]
    """
    x = x_ref[...]

    # Layer 1 (bias folded into W1 via the constant-1 input column).
    h1 = jnp.dot(x, w1_ref[...], preferred_element_type=jnp.float32)
    h1 = jnp.where(h1 > 0, h1, LEAKY_SLOPE * h1)          # LeakyReLU(1)=1 keeps the ones column

    # Layer 2.
    h2 = jnp.dot(h1.astype(jnp.bfloat16), w2_ref[...],
                 preferred_element_type=jnp.float32)
    h2 = jnp.where(h2 > 0, h2, LEAKY_SLOPE * h2)

    # Output layer + sigmoid.
    y = jnp.dot(h2.astype(jnp.bfloat16), w3_ref[...],
                preferred_element_type=jnp.float32)
    out_ref[...] = jax.nn.sigmoid(y).astype(out_ref.dtype)


def gan_forward(z, pars, packed_params, *, tile_b=TILE_B):
    """GAN.forward(z, pars) == generator(z, pars), fused Pallas kernel."""
    w1a, w2a, w3a = packed_params
    batch = z.shape[0]

    # Layout plumbing (not compute): lane-dense augmented input [z | pars | 1 | 0].
    ones = jnp.ones((batch, 1), jnp.float32)
    x = jnp.concatenate([z, pars, ones], axis=1)
    x = jnp.pad(x, ((0, 0), (0, IN_PAD - x.shape[1])))

    padded_batch = tile_b * pl.cdiv(batch, tile_b)
    if padded_batch != batch:
        x = jnp.pad(x, ((0, padded_batch - batch), (0, 0)))
    x = x.astype(jnp.bfloat16)

    grid = (padded_batch // tile_b,)

    flops = 2 * padded_batch * (IN_PAD * HID_PAD + HID_PAD * HID_PAD + HID_PAD * OUT_DIM)
    bytes_accessed = (padded_batch * IN_PAD * 2
                      + (IN_PAD * HID_PAD + HID_PAD * HID_PAD + HID_PAD * OUT_DIM) * 2
                      + padded_batch * OUT_DIM * 4)

    out = pl.pallas_call(
        _generator_kernel,
        out_shape=jax.ShapeDtypeStruct((padded_batch, OUT_DIM), jnp.float32),
        grid=grid,
        in_specs=[
            pl.BlockSpec((tile_b, IN_PAD), lambda i: (i, 0)),     # per-tile batch rows
            pl.BlockSpec((IN_PAD, HID_PAD), lambda i: (0, 0)),    # weights: VMEM-resident
            pl.BlockSpec((HID_PAD, HID_PAD), lambda i: (0, 0)),
            pl.BlockSpec((HID_PAD, OUT_DIM), lambda i: (0, 0)),
        ],
        out_specs=pl.BlockSpec((tile_b, OUT_DIM), lambda i: (i, 0)),
        compiler_params=pltpu.CompilerParams(
            dimension_semantics=("parallel",),
        ),
        cost_estimate=pl.CostEstimate(
            flops=flops,
            transcendentals=padded_batch * OUT_DIM,
            bytes_accessed=bytes_accessed,
        ),
    )(x, w1a, w2a, w3a)

    return out[:batch]


def init_generator_params(key):
    """Deterministic synthetic generator weights (logical, f32, nn.Linear-style)."""
    ks = jax.random.split(key, 6)
    scale1 = 1.0 / jnp.sqrt(LATENT_DIM + PARS_DIM)
    scale2 = 1.0 / jnp.sqrt(HIDDEN_DIM)

    # Weights stored as [in_features, out_features] (pre-transposed nn.Linear).
    w1z = jax.random.normal(ks[0], (LATENT_DIM, HIDDEN_DIM), jnp.float32) * scale1
    w1p = jax.random.normal(ks[1], (PARS_DIM, HIDDEN_DIM), jnp.float32) * scale1
    b1 = jax.random.normal(ks[2], (HIDDEN_DIM,), jnp.float32) * 0.1

    w2 = jax.random.normal(ks[3], (HIDDEN_DIM, HIDDEN_DIM), jnp.float32) * scale2
    b2 = jax.random.normal(ks[4], (HIDDEN_DIM,), jnp.float32) * 0.1

    w3 = jax.random.normal(ks[5], (HIDDEN_DIM, OUT_DIM), jnp.float32) * scale2
    b3 = jnp.zeros((OUT_DIM,), jnp.float32)

    return (w1z, w1p, b1, w2, b2, w3, b3)


def pack_generator_params(params):
    """Pack logical params into padded, bias-folded, bf16 kernel weights."""
    (w1z, w1p, b1, w2, b2, w3, b3) = params

    # W1 augmented: stacked [W1z; W1p], bias row at the constant-1 input column,
    # and a 1.0 that writes the constant-1 column of h1.
    w1a = jnp.zeros((IN_PAD, HID_PAD), jnp.float32)
    w1a = w1a.at[0:LATENT_DIM, 0:HIDDEN_DIM].set(w1z)
    w1a = w1a.at[LATENT_DIM:LATENT_DIM + PARS_DIM, 0:HIDDEN_DIM].set(w1p)
    w1a = w1a.at[ONES_IN_IDX, 0:HIDDEN_DIM].set(b1)
    w1a = w1a.at[ONES_IN_IDX, ONES_HID_IDX].set(1.0)

    # W2 augmented: bias row at the h1 constant-1 column; propagate the 1.
    w2a = jnp.zeros((HID_PAD, HID_PAD), jnp.float32)
    w2a = w2a.at[0:HIDDEN_DIM, 0:HIDDEN_DIM].set(w2)
    w2a = w2a.at[ONES_HID_IDX, 0:HIDDEN_DIM].set(b2)
    w2a = w2a.at[ONES_HID_IDX, ONES_HID_IDX].set(1.0)

    # W3 augmented: bias row at the h2 constant-1 column.
    w3a = jnp.zeros((HID_PAD, OUT_DIM), jnp.float32)
    w3a = w3a.at[0:HIDDEN_DIM, :].set(w3)
    w3a = w3a.at[ONES_HID_IDX, :].set(b3)

    return (w1a.astype(jnp.bfloat16),
            w2a.astype(jnp.bfloat16),
            w3a.astype(jnp.bfloat16))


def reference_forward(z, pars, params):
    """Pure-JAX f32 reference for correctness checking."""
    (w1z, w1p, b1, w2, b2, w3, b3) = params
    h1 = z @ w1z + pars @ w1p + b1
    h1 = jnp.where(h1 > 0, h1, LEAKY_SLOPE * h1)
    h2 = h1 @ w2 + b2
    h2 = jnp.where(h2 > 0, h2, LEAKY_SLOPE * h2)
    y = h2 @ w3 + b3
    return jax.nn.sigmoid(y)


if __name__ == "__main__":
    key = jax.random.PRNGKey(0)
    k_z, k_p, k_w = jax.random.split(key, 3)

    BATCH = 512  # amortize launch/DMA over many samples; exercises a 2-step grid
    z = jax.random.normal(k_z, (BATCH, LATENT_DIM), jnp.float32)      # latent sample
    pars = jax.random.normal(k_p, (BATCH, PARS_DIM), jnp.float32)     # conditioning pars
    params = init_generator_params(k_w)
    packed = pack_generator_params(params)

    out = gan_forward(z, pars, packed)
    out = jax.block_until_ready(out)

    ref = reference_forward(z, pars, params)
    assert out.shape == (BATCH, OUT_DIM)
    # bf16 matmul inputs (f32 accumulation) => relaxed tolerance vs f32 reference.
    assert jnp.allclose(out, ref, atol=2e-2, rtol=0.0), "Pallas output mismatch vs reference"

    # TODO(synk): the critic submodule is unused in GAN.forward (only the generator
    # is invoked), so only the generator path is implemented here.
    print("KERNEL_OK")
</pallas_src>

<mosaic_0001>
module attributes {stable_mosaic.version = 11 : i64} {
  func.func @_generator_kernel(%arg0: i32, %arg1: memref<256x128xbf16, #tpu.memory_space<vmem>>, %arg2: memref<128x128xbf16, #tpu.memory_space<vmem>>, %arg3: memref<128x128xbf16, #tpu.memory_space<vmem>>, %arg4: memref<128x128xbf16, #tpu.memory_space<vmem>>, %arg5: memref<256x128xf32, #tpu.memory_space<vmem>>) attributes {dimension_semantics = [#tpu.dimension_semantics<parallel>], iteration_bounds = array<i64: 2>, scalar_prefetch = 0 : i64, scratch_operands = 0 : i64, tpu.core_type = #tpu.core_type<tc>, window_params = [{transform_indices = @transform_0, window_bounds = array<i64: 256, 128>}, {pipeline_mode = #tpu.pipeline_mode<synchronous>, transform_indices = @transform_1, window_bounds = array<i64: 128, 128>}, {pipeline_mode = #tpu.pipeline_mode<synchronous>, transform_indices = @transform_2, window_bounds = array<i64: 128, 128>}, {pipeline_mode = #tpu.pipeline_mode<synchronous>, transform_indices = @transform_3, window_bounds = array<i64: 128, 128>}, {transform_indices = @transform_4, window_bounds = array<i64: 256, 128>}]} {
    %c0 = arith.constant 0 : index
    %c0_0 = arith.constant 0 : index
    %0 = vector.load %arg1[%c0, %c0_0] : memref<256x128xbf16, #tpu.memory_space<vmem>>, vector<256x128xbf16>
    %c0_1 = arith.constant 0 : index
    %c0_2 = arith.constant 0 : index
    %1 = vector.load %arg2[%c0_1, %c0_2] : memref<128x128xbf16, #tpu.memory_space<vmem>>, vector<128x128xbf16>
    %cst = arith.constant dense<0.000000e+00> : vector<256x128xf32>
    %2 = tpu.matmul %0, %1, %cst {dimension_numbers = #tpu.dot_dimension_numbers<[1], [0], [0], [1], [0, 0, 1, 1], [], []>} : vector<256x128xbf16>, vector<128x128xbf16>, vector<256x128xf32> -> vector<256x128xf32>
    %cst_3 = arith.constant 0.000000e+00 : f32
    %3 = vector.broadcast %cst_3 : f32 to vector<256x128xf32>
    %4 = arith.cmpf ogt, %2, %3 : vector<256x128xf32>
    %cst_4 = arith.constant 2.000000e-01 : f32
    %5 = vector.broadcast %cst_4 : f32 to vector<256x128xf32>
    %6 = arith.mulf %5, %2 : vector<256x128xf32>
    %7 = arith.select %4, %2, %6 : vector<256x128xi1>, vector<256x128xf32>
    %8 = arith.truncf %7 : vector<256x128xf32> to vector<256x128xbf16>
    %c0_5 = arith.constant 0 : index
    %c0_6 = arith.constant 0 : index
    %9 = vector.load %arg3[%c0_5, %c0_6] : memref<128x128xbf16, #tpu.memory_space<vmem>>, vector<128x128xbf16>
    %cst_7 = arith.constant dense<0.000000e+00> : vector<256x128xf32>
    %10 = tpu.matmul %8, %9, %cst_7 {dimension_numbers = #tpu.dot_dimension_numbers<[1], [0], [0], [1], [0, 0, 1, 1], [], []>} : vector<256x128xbf16>, vector<128x128xbf16>, vector<256x128xf32> -> vector<256x128xf32>
    %cst_8 = arith.constant 0.000000e+00 : f32
    %11 = vector.broadcast %cst_8 : f32 to vector<256x128xf32>
    %12 = arith.cmpf ogt, %10, %11 : vector<256x128xf32>
    %cst_9 = arith.constant 2.000000e-01 : f32
    %13 = vector.broadcast %cst_9 : f32 to vector<256x128xf32>
    %14 = arith.mulf %13, %10 : vector<256x128xf32>
    %15 = arith.select %12, %10, %14 : vector<256x128xi1>, vector<256x128xf32>
    %16 = arith.truncf %15 : vector<256x128xf32> to vector<256x128xbf16>
    %c0_10 = arith.constant 0 : index
    %c0_11 = arith.constant 0 : index
    %17 = vector.load %arg4[%c0_10, %c0_11] : memref<128x128xbf16, #tpu.memory_space<vmem>>, vector<128x128xbf16>
    %cst_12 = arith.constant dense<0.000000e+00> : vector<256x128xf32>
    %18 = tpu.matmul %16, %17, %cst_12 {dimension_numbers = #tpu.dot_dimension_numbers<[1], [0], [0], [1], [0, 0, 1, 1], [], []>} : vector<256x128xbf16>, vector<128x128xbf16>, vector<256x128xf32> -> vector<256x128xf32>
    %19 = arith.negf %18 : vector<256x128xf32>
    %20 = math.exp %19 : vector<256x128xf32>
    %cst_13 = arith.constant 1.000000e+00 : f32
    %21 = vector.broadcast %cst_13 : f32 to vector<256x128xf32>
    %22 = arith.addf %21, %20 : vector<256x128xf32>
    %23 = arith.divf %21, %22 : vector<256x128xf32>
    %c0_14 = arith.constant 0 : index
    %c0_15 = arith.constant 0 : index
    %24 = vector.load %arg5[%c0_14, %c0_15] : memref<256x128xf32, #tpu.memory_space<vmem>>, vector<256x128xf32>
    tpu.vector_store %arg5[%c0_14, %c0_15], %23 {strides = array<i32>} : memref<256x128xf32, #tpu.memory_space<vmem>>, vector<256x128xf32>,
    return
  }
  func.func @transform_0(%arg0: i32) -> (i32, i32) {
    %c0_i32 = arith.constant 0 : i32
    %c0_i32_0 = arith.constant 0 : i32
    return %arg0, %c0_i32 : i32, i32
  }
  func.func @transform_1(%arg0: i32) -> (i32, i32) {
    %c0_i32 = arith.constant 0 : i32
    %c0_i32_0 = arith.constant 0 : i32
    %c0_i32_1 = arith.constant 0 : i32
    return %c0_i32, %c0_i32_0 : i32, i32
  }
  func.func @transform_2(%arg0: i32) -> (i32, i32) {
    %c0_i32 = arith.constant 0 : i32
    %c0_i32_0 = arith.constant 0 : i32
    %c0_i32_1 = arith.constant 0 : i32
    return %c0_i32, %c0_i32_0 : i32, i32
  }
  func.func @transform_3(%arg0: i32) -> (i32, i32) {
    %c0_i32 = arith.constant 0 : i32
    %c0_i32_0 = arith.constant 0 : i32
    %c0_i32_1 = arith.constant 0 : i32
    return %c0_i32, %c0_i32_0 : i32, i32
  }
  func.func @transform_4(%arg0: i32) -> (i32, i32) {
    %c0_i32 = arith.constant 0 : i32
    %c0_i32_0 = arith.constant 0 : i32
    return %arg0, %c0_i32 : i32, i32
  }
}

</mosaic_0001>

<llo_original>
// kernel: tpu_custom_call.1
$region0: #{tpu_custom_call.1}
  #allocation0 [shape = 'u32[]', space=smem, size = 0x4, offset = 0x4, fixed_abs, tag = 'smem constant byte address 0x4 - core index']
  #allocation1 [shape = 'u32[72,128]{1,0:T(1,128)}', space=vmem, size = 0x9000, scoped, tag = 'internal scratch']
  %s0 = inlined_call_operand.hbm [shape: bf16[512,128], index: 0, kind: input, shape index: {}]
  %s1 = inlined_call_operand.hbm [shape: bf16[128,128], index: 1, kind: input, shape index: {}]
  %s2 = inlined_call_operand.hbm [shape: bf16[128,128], index: 2, kind: input, shape index: {}]
  %s3 = inlined_call_operand.hbm [shape: bf16[128,128], index: 3, kind: input, shape index: {}]
  %s4 = inlined_call_operand.hbm [shape: f32[512,128], index: 4, kind: output, shape index: {}]
  %s5 = sld [smem:[#allocation0]]
  $region65: #{tpu_custom_call.1} parent=0
    _
  %s7 = ssub.s32 1, %s5
  %s8 = scalar_select 0, %s7, %s5
  $region1: #{tpu_custom_call.1} parent=0
    #allocation2 [shape = 'u8[131072]{0}', space=vmem, size = 0x20000, scoped, tag = 'input window, operand 0']
    #allocation3 [shape = 's32[2]{0}', space=sflag, size = 0x8, scoped, tag = 'scoped memory for tpu_custom_call.1']
    #allocation4 [shape = 's32[2]{0}', space=sflag, size = 0x8, scoped, tag = 'scoped memory for tpu_custom_call.1']
    #allocation5 [shape = 'u8[32768]{0}', space=vmem, size = 0x8000, scoped, tag = 'input window, operand 1, single buffered']
    #allocation6 [shape = 's32[1]{0}', space=sflag, size = 0x4, scoped, tag = 'scoped memory for tpu_custom_call.1']
    #allocation7 [shape = 'u8[32768]{0}', space=vmem, size = 0x8000, scoped, tag = 'input window, operand 2, single buffered']
    #allocation8 [shape = 'u8[32768]{0}', space=vmem, size = 0x8000, scoped, tag = 'input window, operand 3, single buffered']
    #allocation9 [shape = 's32[1]{0}', space=sflag, size = 0x4, scoped, tag = 'scoped memory for tpu_custom_call.1']
    #allocation10 [shape = 'u8[262144]{0}', space=vmem, size = 0x40000, scoped, tag = 'output window, operand 0']
    %9 = vsyncpa [#allocation3], 0
    %s10 = scalar_lea.sflag [#allocation3], 1
    %11 = vsyncpa %s10, 0
    %12 = vsyncpa [#allocation6], 0
    %13 = vsyncpa [#allocation9], 0
    %14 = vsyncpa [#allocation4], 0
    %s15 = scalar_lea.sflag [#allocation4], 1
    %16 = vsyncpa %s15, 0
    loop: start=0, step=1, limit=4
    $region2: #{tpu_custom_call.1} parent=1 // loop_pre_header
      _
    $region3: #{tpu_custom_call.1} parent=1 // loop_header
      %s18 = sphi 0, %s22
      %p19 = scmp.ge.s32.totalorder %s18, 4
      %s28 = sphi 0, %s30
      %s31 = sphi 0, %s28
      %s32 = sphi 0, %s31
      %s48 = sphi 0, %s32
      %s52 = sphi 0, %s52
      %s54 = sphi 0, %s52
      %s55 = sphi 0, %s54
      %s69 = sphi 0, %s55
      %s73 = sphi 0, %s73
      %s75 = sphi 0, %s73
      %s76 = sphi 0, %s75
      %s90 = sphi 0, %s76
      %s94 = sphi 0, %s94
      %s96 = sphi 0, %s94
      %s97 = sphi 0, %s96
      %s111 = sphi 0, %s97
      %s117 = sphi 0, %s119
      %s120 = sphi 0, %s117
      %s121 = sphi 0, %s120
      %s137 = sphi 0, %s121
    $region4: #{tpu_custom_call.1} parent=1 // loop_header_branch
      %21 = sbr.rel (%p19) target = $region8
    $region5: #{tpu_custom_call.1} parent=1 // loop_body
      %s23 = ssub.s32 %s18, 1
      %s24 = ssub.s32 %s18, 2
      %s25 = sadd.s32 %s18, 1
      %s26 = ssub.s32 %s18, %s25
      %p27 = scmp.eq.s32.totalorder %s26, 0
      %s29 = sadd.s32 %s28, 1
      %s30 = scalar_select %p27, %s28, %s29
      %p33 = pneg %p27
      %p34 = scmp.eq.s32.totalorder %s18, 1
      %p35 = por %p33, %p34
      %p36 = scmp.ne.s32.totalorder %s28, %s31
      %p37 = scmp.eq.s32.totalorder %s18, 0
      %p38 = por %p36, %p37
      %p39 = scmp.ne.s32.totalorder %s28, %s31
      %p40 = scmp.eq.s32.totalorder %s23, 1
      %p41 = por %p39, %p40
      %p42 = scmp.ne.s32.totalorder %s31, %s32
      %p43 = scmp.eq.s32.totalorder %s23, 0
      %p44 = por %p42, %p43
      %p45 = scmp.ne.s32.totalorder %s31, %s32
      %p46 = scmp.eq.s32.totalorder %s24, 1
      %p47 = por %p45, %p46
      %p49 = scmp.ne.s32.totalorder %s32, %s48
      %p50 = scmp.eq.s32.totalorder %s24, 0
      %p51 = por %p49, %p50
      %s53 = sadd.s32 %s52, 1
      %p56 = scmp.eq.s32.totalorder %s18, 1
      %p57 = scmp.ne.s32.totalorder %s52, %s54
      %p58 = scmp.eq.s32.totalorder %s18, 0
      %p59 = por %p57, %p58
      %p60 = scmp.ne.s32.totalorder %s52, %s54
      %p61 = scmp.eq.s32.totalorder %s23, 1
      %p62 = por %p60, %p61
      %p63 = scmp.ne.s32.totalorder %s54, %s55
      %p64 = scmp.eq.s32.totalorder %s23, 0
      %p65 = por %p63, %p64
      %p66 = scmp.ne.s32.totalorder %s54, %s55
      %p67 = scmp.eq.s32.totalorder %s24, 1
      %p68 = por %p66, %p67
      %p70 = scmp.ne.s32.totalorder %s55, %s69
      %p71 = scmp.eq.s32.totalorder %s24, 0
      %p72 = por %p70, %p71
      %s74 = sadd.s32 %s73, 1
      %p77 = scmp.eq.s32.totalorder %s18, 1
      %p78 = scmp.ne.s32.totalorder %s73, %s75
      %p79 = scmp.eq.s32.totalorder %s18, 0
      %p80 = por %p78, %p79
      %p81 = scmp.ne.s32.totalorder %s73, %s75
      %p82 = scmp.eq.s32.totalorder %s23, 1
      %p83 = por %p81, %p82
      %p84 = scmp.ne.s32.totalorder %s75, %s76
      %p85 = scmp.eq.s32.totalorder %s23, 0
      %p86 = por %p84, %p85
      %p87 = scmp.ne.s32.totalorder %s75, %s76
      %p88 = scmp.eq.s32.totalorder %s24, 1
      %p89 = por %p87, %p88
      %p91 = scmp.ne.s32.totalorder %s76, %s90
      %p92 = scmp.eq.s32.totalorder %s24, 0
      %p93 = por %p91, %p92
      %s95 = sadd.s32 %s94, 1
      %p98 = scmp.eq.s32.totalorder %s18, 1
      %p99 = scmp.ne.s32.totalorder %s94, %s96
      %p100 = scmp.eq.s32.totalorder %s18, 0
      %p101 = por %p99, %p100
      %p102 = scmp.ne.s32.totalorder %s94, %s96
      %p103 = scmp.eq.s32.totalorder %s23, 1
      %p104 = por %p102, %p103
      %p105 = scmp.ne.s32.totalorder %s96, %s97
      %p106 = scmp.eq.s32.totalorder %s23, 0
      %p107 = por %p105, %p106
      %p108 = scmp.ne.s32.totalorder %s96, %s97
      %p109 = scmp.eq.s32.totalorder %s24, 1
      %p110 = por %p108, %p109
      %p112 = scmp.ne.s32.totalorder %s97, %s111
      %p113 = scmp.eq.s32.totalorder %s24, 0
      %p114 = por %p112, %p113
      %s115 = ssub.s32 %s18, %s25
      %p116 = scmp.eq.s32.totalorder %s115, 0
      %s118 = sadd.s32 %s117, 1
      %s119 = scalar_select %p116, %s117, %s118
      %p122 = pneg %p116
      %p123 = scmp.eq.s32.totalorder %s18, 1
      %p124 = por %p122, %p123
      %p125 = scmp.ne.s32.totalorder %s117, %s120
      %p126 = scmp.eq.s32.totalorder %s18, 0
      %p127 = por %p125, %p126
      %p128 = scmp.ne.s32.totalorder %s117, %s120
      %p129 = scmp.eq.s32.totalorder %s23, 1
      %p130 = por %p128, %p129
      %p131 = scmp.ne.s32.totalorder %s120, %s121
      %p132 = scmp.eq.s32.totalorder %s23, 0
      %p133 = por %p131, %p132
      %p134 = scmp.ne.s32.totalorder %s120, %s121
      %p135 = scmp.eq.s32.totalorder %s24, 1
      %p136 = por %p134, %p135
      %p138 = scmp.ne.s32.totalorder %s121, %s137
      %p139 = scmp.eq.s32.totalorder %s24, 0
      %p140 = por %p138, %p139
      %p141 = scmp.le.s32.totalorder 1, %s18
      %p142 = scmp.lt.s32.totalorder %s18, 3
      %p143 = pnand %p141, %p142
      %p144 = pneg %p143
      // Predicated region
      $region9: #{tpu_custom_call.1} parent=5 // pred_check
        _
      $region10: #{tpu_custom_call.1} parent=5 // pred_check_branch
        %146 = sbr.rel (%p143) target = $region12
      $region11: #{tpu_custom_call.1} parent=5 // pred_region
        %s147 = ssub.s32 %s18, 1
        // Predicated region
        $region13: #{tpu_custom_call.1} parent=11 // pred_check
          %p148 = pneg %p65
        $region14: #{tpu_custom_call.1} parent=11 // pred_check_branch
          %150 = sbr.rel (%p148) target = $region16
        $region15: #{tpu_custom_call.1} parent=11 // pred_region
          %152 = vsyncadd [#allocation6], 0
          %s153 = sshll.u32 %s1, 4
          %s154 = int_to_ptr.hbm [resolvable:$true] %s153
          %s155 = sshll.u32 [#allocation5], 4
          %s156 = int_to_ptr.vmem [resolvable:$true] %s155
          %161 = dma.hbm_to_vmem [thread:$0]  %s154, 1024, %s156, [#allocation6], 64, 64, 4
        $region16: #{tpu_custom_call.1} parent=11 // pred_fallthru
          _
        // Predicated region
        $region17: #{tpu_custom_call.1} parent=11 // pred_check
          %p162 = pneg %p86
        $region18: #{tpu_custom_call.1} parent=11 // pred_check_branch
          %164 = sbr.rel (%p162) target = $region20
        $region19: #{tpu_custom_call.1} parent=11 // pred_region
          %166 = vsyncadd [#allocation6], 0
          %s167 = sshll.u32 %s2, 4
          %s168 = int_to_ptr.hbm [resolvable:$true] %s167
          %s169 = sshll.u32 [#allocation7], 4
          %s170 = int_to_ptr.vmem [resolvable:$true] %s169
          %175 = dma.hbm_to_vmem [thread:$0]  %s168, 1024, %s170, [#allocation6], 64, 64, 4
        $region20: #{tpu_custom_call.1} parent=11 // pred_fallthru
          _
        // Predicated region
        $region21: #{tpu_custom_call.1} parent=11 // pred_check
          %p176 = pneg %p107
        $region22: #{tpu_custom_call.1} parent=11 // pred_check_branch
          %178 = sbr.rel (%p176) target = $region24
        $region23: #{tpu_custom_call.1} parent=11 // pred_region
          %180 = vsyncadd [#allocation9], 0
          %s181 = sshll.u32 %s3, 4
          %s182 = int_to_ptr.hbm [resolvable:$true] %s181
          %s183 = sshll.u32 [#allocation8], 4
          %s184 = int_to_ptr.vmem [resolvable:$true] %s183
          %189 = dma.hbm_to_vmem [thread:$0]  %s182, 1024, %s184, [#allocation9], 64, 64, 4
        $region24: #{tpu_custom_call.1} parent=11 // pred_fallthru
          _
      $region12: #{tpu_custom_call.1} parent=5 // pred_fallthru
        _
      %p190 = scmp.lt.s32.totalorder %s18, 2
      // Predicated region
      $region25: #{tpu_custom_call.1} parent=5 // pred_check
        %p191 = pneg %p190
      $region26: #{tpu_custom_call.1} parent=5 // pred_check_branch
        %193 = sbr.rel (%p191) target = $region28
      $region27: #{tpu_custom_call.1} parent=5 // pred_region
        // Predicated region
        $region29: #{tpu_custom_call.1} parent=27 // pred_check
          %p194 = pneg %p38
        $region30: #{tpu_custom_call.1} parent=27 // pred_check_branch
          %196 = sbr.rel (%p194) target = $region32
        $region31: #{tpu_custom_call.1} parent=27 // pred_region
          %s197 = sand.u32 %s28, 1
          %s198 = scalar_lea.sflag [#allocation3], %s197
          %s199 = sand.u32 %s28, 1
          %s200 = smul.addr %s199, 128
          %s201 = scalar_lea.vmem [#allocation2], %s200
          %s202 = smul.u32 32, %s18
          %204 = vsyncadd %s198, 0
          %s205 = smul.addr %s202, 4
          %s206 = scalar_lea.hbm %s0, %s205
          %s207 = sshll.u32 %s206, 4
          %s208 = int_to_ptr.hbm [resolvable:$true] %s207
          %s209 = sshll.u32 %s201, 4
          %s210 = int_to_ptr.vmem [resolvable:$true] %s209
          %215 = dma.hbm_to_vmem [thread:$0]  %s208, 2048, %s210, %s198, 64, 64, 4
        $region32: #{tpu_custom_call.1} parent=27 // pred_fallthru
          _
      $region28: #{tpu_custom_call.1} parent=5 // pred_fallthru
        _
      %p216 = scmp.le.s32.totalorder 1, %s18
      %p217 = scmp.lt.s32.totalorder %s18, 3
      %p218 = pnand %p216, %p217
      %p219 = pneg %p218
      // Predicated region
      $region33: #{tpu_custom_call.1} parent=5 // pred_check
        _
      $region34: #{tpu_custom_call.1} parent=5 // pred_check_branch
        %221 = sbr.rel (%p218) target = $region36
      $region35: #{tpu_custom_call.1} parent=5 // pred_region
        %s222 = ssub.s32 %s18, 1
        %s223 = sand.u32 %s31, 1
        %s224 = scalar_lea.sflag [#allocation3], %s223
        %s225 = sand.u32 %s31, 1
        %s226 = smul.addr %s225, 128
        %s227 = scalar_lea.vmem [#allocation2], %s226
        // Predicated region
        $region37: #{tpu_custom_call.1} parent=35 // pred_check
          %p228 = pneg %p44
        $region38: #{tpu_custom_call.1} parent=35 // pred_check_branch
          %230 = sbr.rel (%p228) target = $region40
        $region39: #{tpu_custom_call.1} parent=35 // pred_region
          %232 = dma.done %s224, 2048
        $region40: #{tpu_custom_call.1} parent=35 // pred_fallthru
          _
        // Predicated region
        $region41: #{tpu_custom_call.1} parent=35 // pred_check
          %p233 = pneg %p65
        $region42: #{tpu_custom_call.1} parent=35 // pred_check_branch
          %235 = sbr.rel (%p233) target = $region44
        $region43: #{tpu_custom_call.1} parent=35 // pred_region
          %237 = dma.done [#allocation6], 1024
        $region44: #{tpu_custom_call.1} parent=35 // pred_fallthru
          _
        // Predicated region
        $region45: #{tpu_custom_call.1} parent=35 // pred_check
          %p238 = pneg %p86
        $region46: #{tpu_custom_call.1} parent=35 // pred_check_branch
          %240 = sbr.rel (%p238) target = $region48
        $region47: #{tpu_custom_call.1} parent=35 // pred_region
          %242 = dma.done [#allocation6], 1024
        $region48: #{tpu_custom_call.1} parent=35 // pred_fallthru
          _
        // Predicated region
        $region49: #{tpu_custom_call.1} parent=35 // pred_check
          %p243 = pneg %p107
        $region50: #{tpu_custom_call.1} parent=35 // pred_check_branch
          %245 = sbr.rel (%p243) target = $region52
        $region51: #{tpu_custom_call.1} parent=35 // pred_region
          %247 = dma.done [#allocation9], 1024
        $region52: #{tpu_custom_call.1} parent=35 // pred_fallthru
          _
        %s248 = sand.u32 %s31, 1
        %s249 = scalar_lea.sflag [#allocation3], %s248
        %s250 = sand.u32 %s31, 1
        %s251 = smul.addr %s250, 128
        %s252 = scalar_lea.vmem [#allocation2], %s251
        %p253 = pneg %p44
        %p254 = pneg %p41
        %p255 = pneg %p65
        %p256 = pneg %p62
        %p257 = pneg %p86
        %p258 = pneg %p83
        %p259 = pneg %p107
        %p260 = pneg %p104
        %p261 = pneg %p133
        %p262 = pneg %p130
        %s263 = sand.u32 %s120, 1
        %s264 = scalar_lea.sflag [#allocation4], %s263
        %s265 = sand.u32 %s120, 1
        %s266 = smul.addr %s265, 256
        %s267 = scalar_lea.vmem [#allocation10], %s266
        %s268 = smul.u32 32, %s23
        %s269 = smul.u32 32, %s23
        %v270 = vld [vmem:[%s227] sm:$0xf]
        %v271 = vld [vmem:[%s227 + $0x4] sm:$0xf]
        %v272 = vld [vmem:[%s227 + $0x8] sm:$0xf]
        %v273 = vld [vmem:[%s227 + $0xc] sm:$0xf]
        %v274 = vld [vmem:[%s227 + $0x10] sm:$0xf]
        %v275 = vld [vmem:[%s227 + $0x14] sm:$0xf]
        %v276 = vld [vmem:[%s227 + $0x18] sm:$0xf]
        %v277 = vld [vmem:[%s227 + $0x1c] sm:$0xf]
        %v278 = vld [vmem:[%s227 + $0x20] sm:$0xf]
        %v279 = vld [vmem:[%s227 + $0x24] sm:$0xf]
        %v280 = vld [vmem:[%s227 + $0x28] sm:$0xf]
        %v281 = vld [vmem:[%s227 + $0x2c] sm:$0xf]
        %v282 = vld [vmem:[%s227 + $0x30] sm:$0xf]
        %v283 = vld [vmem:[%s227 + $0x34] sm:$0xf]
        %v284 = vld [vmem:[%s227 + $0x38] sm:$0xf]
        %v285 = vld [vmem:[%s227 + $0x3c] sm:$0xf]
        %v286 = vld [vmem:[%s227 + $0x40] sm:$0xf]
        %v287 = vld [vmem:[%s227 + $0x44] sm:$0xf]
        %v288 = vld [vmem:[%s227 + $0x48] sm:$0xf]
        %v289 = vld [vmem:[%s227 + $0x4c] sm:$0xf]
        %v290 = vld [vmem:[%s227 + $0x50] sm:$0xf]
        %v291 = vld [vmem:[%s227 + $0x54] sm:$0xf]
        %v292 = vld [vmem:[%s227 + $0x58] sm:$0xf]
        %v293 = vld [vmem:[%s227 + $0x5c] sm:$0xf]
        %v294 = vld [vmem:[%s227 + $0x60] sm:$0xf]
        %v295 = vld [vmem:[%s227 + $0x64] sm:$0xf]
        %v296 = vld [vmem:[%s227 + $0x68] sm:$0xf]
        %v297 = vld [vmem:[%s227 + $0x6c] sm:$0xf]
        %v298 = vld [vmem:[%s227 + $0x70] sm:$0xf]
        %v299 = vld [vmem:[%s227 + $0x74] sm:$0xf]
        %v300 = vld [vmem:[%s227 + $0x78] sm:$0xf]
        %v301 = vld [vmem:[%s227 + $0x7c] sm:$0xf]
        %v302 = vld [vmem:[#allocation5] sm:$0xf]
        %v303 = vld [vmem:[#allocation5 + $0x4] sm:$0xf]
        %v304 = vld [vmem:[#allocation5 + $0x8] sm:$0xf]
        %v305 = vld [vmem:[#allocation5 + $0xc] sm:$0xf]
        %v306 = vld [vmem:[#allocation5 + $0x10] sm:$0xf]
        %v307 = vld [vmem:[#allocation5 + $0x14] sm:$0xf]
        %v308 = vld [vmem:[#allocation5 + $0x18] sm:$0xf]
        %v309 = vld [vmem:[#allocation5 + $0x1c] sm:$0xf]
        %v310 = vld [vmem:[#allocation5 + $0x20] sm:$0xf]
        %v311 = vld [vmem:[#allocation5 + $0x24] sm:$0xf]
        %v312 = vld [vmem:[#allocation5 + $0x28] sm:$0xf]
        %v313 = vld [vmem:[#allocation5 + $0x2c] sm:$0xf]
        %v314 = vld [vmem:[#allocation5 + $0x30] sm:$0xf]
        %v315 = vld [vmem:[#allocation5 + $0x34] sm:$0xf]
        %v316 = vld [vmem:[#allocation5 + $0x38] sm:$0xf]
        %v317 = vld [vmem:[#allocation5 + $0x3c] sm:$0xf]
        %v350 = vunpack.c.l.b16 %v270
        %v351 = vunpack.c.l.b16 %v271
        %v352 = vunpack.c.l.b16 %v272
        %v353 = vunpack.c.l.b16 %v273
        %v354 = vunpack.c.l.b16 %v274
        %v355 = vunpack.c.l.b16 %v275
        %v356 = vunpack.c.l.b16 %v276
        %v357 = vunpack.c.l.b16 %v277
        %v358 = vunpack.c.l.b16 %v278
        %v359 = vunpack.c.l.b16 %v279
        %v360 = vunpack.c.l.b16 %v280
        %v361 = vunpack.c.l.b16 %v281
        %v362 = vunpack.c.l.b16 %v282
        %v363 = vunpack.c.l.b16 %v283
        %v364 = vunpack.c.l.b16 %v284
        %v365 = vunpack.c.l.b16 %v285
        %v366 = vunpack.c.l.b16 %v286
        %v367 = vunpack.c.l.b16 %v287
        %v368 = vunpack.c.l.b16 %v288
        %v369 = vunpack.c.l.b16 %v289
        %v370 = vunpack.c.l.b16 %v290
        %v371 = vunpack.c.l.b16 %v291
        %v372 = vunpack.c.l.b16 %v292
        %v373 = vunpack.c.l.b16 %v293
        %v374 = vunpack.c.l.b16 %v294
        %v375 = vunpack.c.l.b16 %v295
        %v376 = vunpack.c.l.b16 %v296
        %v377 = vunpack.c.l.b16 %v297
        %v378 = vunpack.c.l.b16 %v298
        %v379 = vunpack.c.l.b16 %v299
        %v380 = vunpack.c.l.b16 %v300
        %v381 = vunpack.c.l.b16 %v301
        %v382 = vpack.c.b16 %v351, %v350
        %v383 = vpack.c.b16 %v353, %v352
        %v384 = vpack.c.b16 %v355, %v354
        %v385 = vpack.c.b16 %v357, %v356
        %v386 = vpack.c.b16 %v359, %v358
        %v387 = vpack.c.b16 %v361, %v360
        %v388 = vpack.c.b16 %v363, %v362
        %v389 = vpack.c.b16 %v365, %v364
        %v390 = vpack.c.b16 %v367, %v366
        %v391 = vpack.c.b16 %v369, %v368
        %v392 = vpack.c.b16 %v371, %v370
        %v393 = vpack.c.b16 %v373, %v372
        %v394 = vpack.c.b16 %v375, %v374
        %v395 = vpack.c.b16 %v377, %v376
        %v396 = vpack.c.b16 %v379, %v378
        %v397 = vpack.c.b16 %v381, %v380
        %v430 = vunpack.c.l.b16 %v302
        %v431 = vunpack.c.l.b16 %v303
        %v432 = vunpack.c.l.b16 %v304
        %v433 = vunpack.c.l.b16 %v305
        %v434 = vunpack.c.l.b16 %v306
        %v435 = vunpack.c.l.b16 %v307
        %v436 = vunpack.c.l.b16 %v308
        %v437 = vunpack.c.l.b16 %v309
        %v438 = vunpack.c.l.b16 %v310
        %v439 = vunpack.c.l.b16 %v311
        %v440 = vunpack.c.l.b16 %v312
        %v441 = vunpack.c.l.b16 %v313
        %v442 = vunpack.c.l.b16 %v314
        %v443 = vunpack.c.l.b16 %v315
        %v444 = vunpack.c.l.b16 %v316
        %v445 = vunpack.c.l.b16 %v317
        %v446 = vpack.c.b16 %v431, %v430
        %v447 = vpack.c.b16 %v433, %v432
        %v448 = vpack.c.b16 %v435, %v434
        %v449 = vpack.c.b16 %v437, %v436
        %v450 = vpack.c.b16 %v439, %v438
        %v451 = vpack.c.b16 %v441, %v440
        %v452 = vpack.c.b16 %v443, %v442
        %v453 = vpack.c.b16 %v445, %v444
        %462 = vmatpush.bf16.msra.mxu0 %v453
        %463 = vmatpush.bf16.msra.mxu0 %v452
        %464 = vmatpush.bf16.msra.mxu0 %v451
        %465 = vmatpush.bf16.msra.mxu0 %v450
        %466 = vmatpush.bf16.msra.mxu0 %v449
        %467 = vmatpush.bf16.msra.mxu0 %v448
        %468 = vmatpush.bf16.msra.mxu0 %v447
        %469 = vmatpush.bf16.msra.mxu0 %v446
        %470 = vmatmul.bf16.gmra.mxu0 %v382
        %v471 = vpop.f32.mrf.mxu0
        %v472 = vadd.f32 0.0, %v471
        %v473 = vpop.f32.mrf.mxu0
        %v474 = vadd.f32 0.0, %v473
        %475 = vmatmul.bf16.gmra.mxu0 %v383
        %v476 = vpop.f32.mrf.mxu0
        %v477 = vadd.f32 0.0, %v476
        %v478 = vpop.f32.mrf.mxu0
        %v479 = vadd.f32 0.0, %v478
        %480 = vmatmul.bf16.gmra.mxu0 %v384
        %v481 = vpop.f32.mrf.mxu0
        %v482 = vadd.f32 0.0, %v481
        %v483 = vpop.f32.mrf.mxu0
        %v484 = vadd.f32 0.0, %v483
        %485 = vmatmul.bf16.gmra.mxu0 %v385
        %v486 = vpop.f32.mrf.mxu0
        %v487 = vadd.f32 0.0, %v486
        %v488 = vpop.f32.mrf.mxu0
        %v489 = vadd.f32 0.0, %v488
        %490 = vmatmul.bf16.gmra.mxu0 %v386
        %v491 = vpop.f32.mrf.mxu0
        %v492 = vadd.f32 0.0, %v491
        %v493 = vpop.f32.mrf.mxu0
        %v494 = vadd.f32 0.0, %v493
        %495 = vmatmul.bf16.gmra.mxu0 %v387
        %v496 = vpop.f32.mrf.mxu0
        %v497 = vadd.f32 0.0, %v496
        %v498 = vpop.f32.mrf.mxu0
        %v499 = vadd.f32 0.0, %v498
        %500 = vmatmul.bf16.gmra.mxu0 %v388
        %v501 = vpop.f32.mrf.mxu0
        %v502 = vadd.f32 0.0, %v501
        %v503 = vpop.f32.mrf.mxu0
        %v504 = vadd.f32 0.0, %v503
        %505 = vmatmul.bf16.gmra.mxu0 %v389
        %v506 = vpop.f32.mrf.mxu0
        %v507 = vadd.f32 0.0, %v506
        %v508 = vpop.f32.mrf.mxu0
        %v509 = vadd.f32 0.0, %v508
        %510 = vmatmul.bf16.gmra.mxu0 %v390
        %v511 = vpop.f32.mrf.mxu0
        %v512 = vadd.f32 0.0, %v511
        %v513 = vpop.f32.mrf.mxu0
        %v514 = vadd.f32 0.0, %v513
        %515 = vmatmul.bf16.gmra.mxu0 %v391
        %v516 = vpop.f32.mrf.mxu0
        %v517 = vadd.f32 0.0, %v516
        %v518 = vpop.f32.mrf.mxu0
        %v519 = vadd.f32 0.0, %v518
        %520 = vmatmul.bf16.gmra.mxu0 %v392
        %v521 = vpop.f32.mrf.mxu0
        %v522 = vadd.f32 0.0, %v521
        %v523 = vpop.f32.mrf.mxu0
        %v524 = vadd.f32 0.0, %v523
        %525 = vmatmul.bf16.gmra.mxu0 %v393
        %v526 = vpop.f32.mrf.mxu0
        %v527 = vadd.f32 0.0, %v526
        %v528 = vpop.f32.mrf.mxu0
        %v529 = vadd.f32 0.0, %v528
        %530 = vmatmul.bf16.gmra.mxu0 %v394
        %v531 = vpop.f32.mrf.mxu0
        %v532 = vadd.f32 0.0, %v531
        %v533 = vpop.f32.mrf.mxu0
        %v534 = vadd.f32 0.0, %v533
        %535 = vmatmul.bf16.gmra.mxu0 %v395
        %v536 = vpop.f32.mrf.mxu0
        %v537 = vadd.f32 0.0, %v536
        %v538 = vpop.f32.mrf.mxu0
        %v539 = vadd.f32 0.0, %v538
        %540 = vmatmul.bf16.gmra.mxu0 %v396
        %v541 = vpop.f32.mrf.mxu0
        %v542 = vadd.f32 0.0, %v541
        %v543 = vpop.f32.mrf.mxu0
        %v544 = vadd.f32 0.0, %v543
        %545 = vmatmul.bf16.gmra.mxu0 %v397
        %v546 = vpop.f32.mrf.mxu0
        %v547 = vadd.f32 0.0, %v546
        %v548 = vpop.f32.mrf.mxu0
        %v549 = vadd.f32 0.0, %v548
        %550 = vdwg.mxu0
        %vm551 = vcmp.gt.f32.partialorder %v472, 0.0
        %vm552 = vcmp.gt.f32.partialorder %v474, 0.0
        %vm553 = vcmp.gt.f32.partialorder %v477, 0.0
        %vm554 = vcmp.gt.f32.partialorder %v479, 0.0
        %vm555 = vcmp.gt.f32.partialorder %v482, 0.0
        %vm556 = vcmp.gt.f32.partialorder %v484, 0.0
        %vm557 = vcmp.gt.f32.partialorder %v487, 0.0
        %vm558 = vcmp.gt.f32.partialorder %v489, 0.0
        %vm559 = vcmp.gt.f32.partialorder %v492, 0.0
        %vm560 = vcmp.gt.f32.partialorder %v494, 0.0
        %vm561 = vcmp.gt.f32.partialorder %v497, 0.0
        %vm562 = vcmp.gt.f32.partialorder %v499, 0.0
        %vm563 = vcmp.gt.f32.partialorder %v502, 0.0
        %vm564 = vcmp.gt.f32.partialorder %v504, 0.0
        %vm565 = vcmp.gt.f32.partialorder %v507, 0.0
        %vm566 = vcmp.gt.f32.partialorder %v509, 0.0
        %vm567 = vcmp.gt.f32.partialorder %v512, 0.0
        %vm568 = vcmp.gt.f32.partialorder %v514, 0.0
        %vm569 = vcmp.gt.f32.partialorder %v517, 0.0
        %vm570 = vcmp.gt.f32.partialorder %v519, 0.0
        %vm571 = vcmp.gt.f32.partialorder %v522, 0.0
        %vm572 = vcmp.gt.f32.partialorder %v524, 0.0
        %vm573 = vcmp.gt.f32.partialorder %v527, 0.0
        %vm574 = vcmp.gt.f32.partialorder %v529, 0.0
        %vm575 = vcmp.gt.f32.partialorder %v532, 0.0
        %vm576 = vcmp.gt.f32.partialorder %v534, 0.0
        %vm577 = vcmp.gt.f32.partialorder %v537, 0.0
        %vm578 = vcmp.gt.f32.partialorder %v539, 0.0
        %vm579 = vcmp.gt.f32.partialorder %v542, 0.0
        %vm580 = vcmp.gt.f32.partialorder %v544, 0.0
        %vm581 = vcmp.gt.f32.partialorder %v547, 0.0
        %vm582 = vcmp.gt.f32.partialorder %v549, 0.0
        %v583 = vmul.f32 %v472, 0.2
        %v584 = vmul.f32 %v474, 0.2
        %v585 = vmul.f32 %v477, 0.2
        %v586 = vmul.f32 %v479, 0.2
        %v587 = vmul.f32 %v482, 0.2
        %v588 = vmul.f32 %v484, 0.2
        %v589 = vmul.f32 %v487, 0.2
        %v590 = vmul.f32 %v489, 0.2
        %v591 = vmul.f32 %v492, 0.2
        %v592 = vmul.f32 %v494, 0.2
        %v593 = vmul.f32 %v497, 0.2
        %v594 = vmul.f32 %v499, 0.2
        %v595 = vmul.f32 %v502, 0.2
        %v596 = vmul.f32 %v504, 0.2
        %v597 = vmul.f32 %v507, 0.2
        %v598 = vmul.f32 %v509, 0.2
        %v599 = vmul.f32 %v512, 0.2
        %v600 = vmul.f32 %v514, 0.2
        %v601 = vmul.f32 %v517, 0.2
        %v602 = vmul.f32 %v519, 0.2
        %v603 = vmul.f32 %v522, 0.2
        %v604 = vmul.f32 %v524, 0.2
        %v605 = vmul.f32 %v527, 0.2
        %v606 = vmul.f32 %v529, 0.2
        %v607 = vmul.f32 %v532, 0.2
        %v608 = vmul.f32 %v534, 0.2
        %v609 = vmul.f32 %v537, 0.2
        %v610 = vmul.f32 %v539, 0.2
        %v611 = vmul.f32 %v542, 0.2
        %v612 = vmul.f32 %v544, 0.2
        %v613 = vmul.f32 %v547, 0.2
        %v614 = vmul.f32 %v549, 0.2
        %v615 = vsel %vm551, %v472, %v583
        %v616 = vsel %vm552, %v474, %v584
        %v617 = vsel %vm553, %v477, %v585
        %v618 = vsel %vm554, %v479, %v586
        %v619 = vsel %vm555, %v482, %v587
        %v620 = vsel %vm556, %v484, %v588
        %v621 = vsel %vm557, %v487, %v589
        %v622 = vsel %vm558, %v489, %v590
        %v623 = vsel %vm559, %v492, %v591
        %v624 = vsel %vm560, %v494, %v592
        %v625 = vsel %vm561, %v497, %v593
        %v626 = vsel %vm562, %v499, %v594
        %v627 = vsel %vm563, %v502, %v595
        %v628 = vsel %vm564, %v504, %v596
        %v629 = vsel %vm565, %v507, %v597
        %v630 = vsel %vm566, %v509, %v598
        %v631 = vsel %vm567, %v512, %v599
        %v632 = vsel %vm568, %v514, %v600
        %v633 = vsel %vm569, %v517, %v601
        %v634 = vsel %vm570, %v519, %v602
        %v635 = vsel %vm571, %v522, %v603
        %v636 = vsel %vm572, %v524, %v604
        %v637 = vsel %vm573, %v527, %v605
        %v638 = vsel %vm574, %v529, %v606
        %v639 = vsel %vm575, %v532, %v607
        %v640 = vsel %vm576, %v534, %v608
        %v641 = vsel %vm577, %v537, %v609
        %v642 = vsel %vm578, %v539, %v610
        %v643 = vsel %vm579, %v542, %v611
        %v644 = vsel %vm580, %v544, %v612
        %v645 = vsel %vm581, %v547, %v613
        %v646 = vsel %vm582, %v549, %v614
        %v647 = vpack.c.bf16 %v616, %v615
        %v648 = vpack.c.bf16 %v618, %v617
        %v649 = vpack.c.bf16 %v620, %v619
        %v650 = vpack.c.bf16 %v622, %v621
        %v651 = vpack.c.bf16 %v624, %v623
        %v652 = vpack.c.bf16 %v626, %v625
        %v653 = vpack.c.bf16 %v628, %v627
        %v654 = vpack.c.bf16 %v630, %v629
        %v655 = vpack.c.bf16 %v632, %v631
        %v656 = vpack.c.bf16 %v634, %v633
        %v657 = vpack.c.bf16 %v636, %v635
        %v658 = vpack.c.bf16 %v638, %v637
        %v659 = vpack.c.bf16 %v640, %v639
        %v660 = vpack.c.bf16 %v642, %v641
        %v661 = vpack.c.bf16 %v644, %v643
        %v662 = vpack.c.bf16 %v646, %v645
        %v663 = vld [vmem:[#allocation7] sm:$0xf]
        %v664 = vld [vmem:[#allocation7 + $0x4] sm:$0xf]
        %v665 = vld [vmem:[#allocation7 + $0x8] sm:$0xf]
        %v666 = vld [vmem:[#allocation7 + $0xc] sm:$0xf]
        %v667 = vld [vmem:[#allocation7 + $0x10] sm:$0xf]
        %v668 = vld [vmem:[#allocation7 + $0x14] sm:$0xf]
        %v669 = vld [vmem:[#allocation7 + $0x18] sm:$0xf]
        %v670 = vld [vmem:[#allocation7 + $0x1c] sm:$0xf]
        %v671 = vld [vmem:[#allocation7 + $0x20] sm:$0xf]
        %v672 = vld [vmem:[#allocation7 + $0x24] sm:$0xf]
        %v673 = vld [vmem:[#allocation7 + $0x28] sm:$0xf]
        %v674 = vld [vmem:[#allocation7 + $0x2c] sm:$0xf]
        %v675 = vld [vmem:[#allocation7 + $0x30] sm:$0xf]
        %v676 = vld [vmem:[#allocation7 + $0x34] sm:$0xf]
        %v677 = vld [vmem:[#allocation7 + $0x38] sm:$0xf]
        %v678 = vld [vmem:[#allocation7 + $0x3c] sm:$0xf]
        %v695 = vunpack.c.l.b16 %v663
        %v696 = vunpack.c.l.b16 %v664
        %v697 = vunpack.c.l.b16 %v665
        %v698 = vunpack.c.l.b16 %v666
        %v699 = vunpack.c.l.b16 %v667
        %v700 = vunpack.c.l.b16 %v668
        %v701 = vunpack.c.l.b16 %v669
        %v702 = vunpack.c.l.b16 %v670
        %v703 = vunpack.c.l.b16 %v671
        %v704 = vunpack.c.l.b16 %v672
        %v705 = vunpack.c.l.b16 %v673
        %v706 = vunpack.c.l.b16 %v674
        %v707 = vunpack.c.l.b16 %v675
        %v708 = vunpack.c.l.b16 %v676
        %v709 = vunpack.c.l.b16 %v677
        %v710 = vunpack.c.l.b16 %v678
        %v711 = vpack.c.b16 %v696, %v695
        %v712 = vpack.c.b16 %v698, %v697
        %v713 = vpack.c.b16 %v700, %v699
        %v714 = vpack.c.b16 %v702, %v701
        %v715 = vpack.c.b16 %v704, %v703
        %v716 = vpack.c.b16 %v706, %v705
        %v717 = vpack.c.b16 %v708, %v707
        %v718 = vpack.c.b16 %v710, %v709
        %727 = vmatpush.bf16.msra.mxu0 %v718
        %728 = vmatpush.bf16.msra.mxu0 %v717
        %729 = vmatpush.bf16.msra.mxu0 %v716
        %730 = vmatpush.bf16.msra.mxu0 %v715
        %731 = vmatpush.bf16.msra.mxu0 %v714
        %732 = vmatpush.bf16.msra.mxu0 %v713
        %733 = vmatpush.bf16.msra.mxu0 %v712
        %734 = vmatpush.bf16.msra.mxu0 %v711
        %735 = vmatmul.bf16.gmra.mxu0 %v647
        %v736 = vpop.f32.mrf.mxu0
        %v737 = vadd.f32 0.0, %v736
        %v738 = vpop.f32.mrf.mxu0
        %v739 = vadd.f32 0.0, %v738
        %740 = vmatmul.bf16.gmra.mxu0 %v648
        %v741 = vpop.f32.mrf.mxu0
        %v742 = vadd.f32 0.0, %v741
        %v743 = vpop.f32.mrf.mxu0
        %v744 = vadd.f32 0.0, %v743
        %745 = vmatmul.bf16.gmra.mxu0 %v649
        %v746 = vpop.f32.mrf.mxu0
        %v747 = vadd.f32 0.0, %v746
        %v748 = vpop.f32.mrf.mxu0
        %v749 = vadd.f32 0.0, %v748
        %750 = vmatmul.bf16.gmra.mxu0 %v650
        %v751 = vpop.f32.mrf.mxu0
        %v752 = vadd.f32 0.0, %v751
        %v753 = vpop.f32.mrf.mxu0
        %v754 = vadd.f32 0.0, %v753
        %755 = vmatmul.bf16.gmra.mxu0 %v651
        %v756 = vpop.f32.mrf.mxu0
        %v757 = vadd.f32 0.0, %v756
        %v758 = vpop.f32.mrf.mxu0
        %v759 = vadd.f32 0.0, %v758
        %760 = vmatmul.bf16.gmra.mxu0 %v652
        %v761 = vpop.f32.mrf.mxu0
        %v762 = vadd.f32 0.0, %v761
        %v763 = vpop.f32.mrf.mxu0
        %v764 = vadd.f32 0.0, %v763
        %765 = vmatmul.bf16.gmra.mxu0 %v653
        %v766 = vpop.f32.mrf.mxu0
        %v767 = vadd.f32 0.0, %v766
        %v768 = vpop.f32.mrf.mxu0
        %v769 = vadd.f32 0.0, %v768
        %770 = vmatmul.bf16.gmra.mxu0 %v654
        %v771 = vpop.f32.mrf.mxu0
        %v772 = vadd.f32 0.0, %v771
        %v773 = vpop.f32.mrf.mxu0
        %v774 = vadd.f32 0.0, %v773
        %775 = vmatmul.bf16.gmra.mxu0 %v655
        %v776 = vpop.f32.mrf.mxu0
        %v777 = vadd.f32 0.0, %v776
        %v778 = vpop.f32.mrf.mxu0
        %v779 = vadd.f32 0.0, %v778
        %780 = vmatmul.bf16.gmra.mxu0 %v656
        %v781 = vpop.f32.mrf.mxu0
        %v782 = vadd.f32 0.0, %v781
        %v783 = vpop.f32.mrf.mxu0
        %v784 = vadd.f32 0.0, %v783
        %785 = vmatmul.bf16.gmra.mxu0 %v657
        %v786 = vpop.f32.mrf.mxu0
        %v787 = vadd.f32 0.0, %v786
        %v788 = vpop.f32.mrf.mxu0
        %v789 = vadd.f32 0.0, %v788
        %790 = vmatmul.bf16.gmra.mxu0 %v658
        %v791 = vpop.f32.mrf.mxu0
        %v792 = vadd.f32 0.0, %v791
        %v793 = vpop.f32.mrf.mxu0
        %v794 = vadd.f32 0.0, %v793
        %795 = vmatmul.bf16.gmra.mxu0 %v659
        %v796 = vpop.f32.mrf.mxu0
        %v797 = vadd.f32 0.0, %v796
        %v798 = vpop.f32.mrf.mxu0
        %v799 = vadd.f32 0.0, %v798
        %800 = vmatmul.bf16.gmra.mxu0 %v660
        %v801 = vpop.f32.mrf.mxu0
        %v802 = vadd.f32 0.0, %v801
        %v803 = vpop.f32.mrf.mxu0
        %v804 = vadd.f32 0.0, %v803
        %805 = vmatmul.bf16.gmra.mxu0 %v661
        %v806 = vpop.f32.mrf.mxu0
        %v807 = vadd.f32 0.0, %v806
        %v808 = vpop.f32.mrf.mxu0
        %v809 = vadd.f32 0.0, %v808
        %810 = vmatmul.bf16.gmra.mxu0 %v662
        %v811 = vpop.f32.mrf.mxu0
        %v812 = vadd.f32 0.0, %v811
        %v813 = vpop.f32.mrf.mxu0
        %v814 = vadd.f32 0.0, %v813
        %815 = vdwg.mxu0
        %vm816 = vcmp.gt.f32.partialorder %v737, 0.0
        %vm817 = vcmp.gt.f32.partialorder %v739, 0.0
        %vm818 = vcmp.gt.f32.partialorder %v742, 0.0
        %vm819 = vcmp.gt.f32.partialorder %v744, 0.0
        %vm820 = vcmp.gt.f32.partialorder %v747, 0.0
        %vm821 = vcmp.gt.f32.partialorder %v749, 0.0
        %vm822 = vcmp.gt.f32.partialorder %v752, 0.0
        %vm823 = vcmp.gt.f32.partialorder %v754, 0.0
        %vm824 = vcmp.gt.f32.partialorder %v757, 0.0
        %vm825 = vcmp.gt.f32.partialorder %v759, 0.0
        %vm826 = vcmp.gt.f32.partialorder %v762, 0.0
        %vm827 = vcmp.gt.f32.partialorder %v764, 0.0
        %vm828 = vcmp.gt.f32.partialorder %v767, 0.0
        %vm829 = vcmp.gt.f32.partialorder %v769, 0.0
        %vm830 = vcmp.gt.f32.partialorder %v772, 0.0
        %vm831 = vcmp.gt.f32.partialorder %v774, 0.0
        %vm832 = vcmp.gt.f32.partialorder %v777, 0.0
        %vm833 = vcmp.gt.f32.partialorder %v779, 0.0
        %vm834 = vcmp.gt.f32.partialorder %v782, 0.0
        %vm835 = vcmp.gt.f32.partialorder %v784, 0.0
        %vm836 = vcmp.gt.f32.partialorder %v787, 0.0
        %vm837 = vcmp.gt.f32.partialorder %v789, 0.0
        %vm838 = vcmp.gt.f32.partialorder %v792, 0.0
        %vm839 = vcmp.gt.f32.partialorder %v794, 0.0
        %vm840 = vcmp.gt.f32.partialorder %v797, 0.0
        %vm841 = vcmp.gt.f32.partialorder %v799, 0.0
        %vm842 = vcmp.gt.f32.partialorder %v802, 0.0
        %vm843 = vcmp.gt.f32.partialorder %v804, 0.0
        %vm844 = vcmp.gt.f32.partialorder %v807, 0.0
        %vm845 = vcmp.gt.f32.partialorder %v809, 0.0
        %vm846 = vcmp.gt.f32.partialorder %v812, 0.0
        %vm847 = vcmp.gt.f32.partialorder %v814, 0.0
        %v848 = vmul.f32 %v737, 0.2
        %v849 = vmul.f32 %v739, 0.2
        %v850 = vmul.f32 %v742, 0.2
        %v851 = vmul.f32 %v744, 0.2
        %v852 = vmul.f32 %v747, 0.2
        %v853 = vmul.f32 %v749, 0.2
        %v854 = vmul.f32 %v752, 0.2
        %v855 = vmul.f32 %v754, 0.2
        %v856 = vmul.f32 %v757, 0.2
        %v857 = vmul.f32 %v759, 0.2
        %v858 = vmul.f32 %v762, 0.2
        %v859 = vmul.f32 %v764, 0.2
        %v860 = vmul.f32 %v767, 0.2
        %v861 = vmul.f32 %v769, 0.2
        %v862 = vmul.f32 %v772, 0.2
        %v863 = vmul.f32 %v774, 0.2
        %v864 = vmul.f32 %v777, 0.2
        %v865 = vmul.f32 %v779, 0.2
        %v866 = vmul.f32 %v782, 0.2
        %v867 = vmul.f32 %v784, 0.2
        %v868 = vmul.f32 %v787, 0.2
        %v869 = vmul.f32 %v789, 0.2
        %v870 = vmul.f32 %v792, 0.2
        %v871 = vmul.f32 %v794, 0.2
        %v872 = vmul.f32 %v797, 0.2
        %v873 = vmul.f32 %v799, 0.2
        %v874 = vmul.f32 %v802, 0.2
        %v875 = vmul.f32 %v804, 0.2
        %v876 = vmul.f32 %v807, 0.2
        %v877 = vmul.f32 %v809, 0.2
        %v878 = vmul.f32 %v812, 0.2
        %v879 = vmul.f32 %v814, 0.2
        %v880 = vsel %vm816, %v737, %v848
        %v881 = vsel %vm817, %v739, %v849
        %v882 = vsel %vm818, %v742, %v850
        %v883 = vsel %vm819, %v744, %v851
        %v884 = vsel %vm820, %v747, %v852
        %v885 = vsel %vm821, %v749, %v853
        %v886 = vsel %vm822, %v752, %v854
        %v887 = vsel %vm823, %v754, %v855
        %v888 = vsel %vm824, %v757, %v856
        %v889 = vsel %vm825, %v759, %v857
        %v890 = vsel %vm826, %v762, %v858
        %v891 = vsel %vm827, %v764, %v859
        %v892 = vsel %vm828, %v767, %v860
        %v893 = vsel %vm829, %v769, %v861
        %v894 = vsel %vm830, %v772, %v862
        %v895 = vsel %vm831, %v774, %v863
        %v896 = vsel %vm832, %v777, %v864
        %v897 = vsel %vm833, %v779, %v865
        %v898 = vsel %vm834, %v782, %v866
        %v899 = vsel %vm835, %v784, %v867
        %v900 = vsel %vm836, %v787, %v868
        %v901 = vsel %vm837, %v789, %v869
        %v902 = vsel %vm838, %v792, %v870
        %v903 = vsel %vm839, %v794, %v871
        %v904 = vsel %vm840, %v797, %v872
        %v905 = vsel %vm841, %v799, %v873
        %v906 = vsel %vm842, %v802, %v874
        %v907 = vsel %vm843, %v804, %v875
        %v908 = vsel %vm844, %v807, %v876
        %v909 = vsel %vm845, %v809, %v877
        %v910 = vsel %vm846, %v812, %v878
        %v911 = vsel %vm847, %v814, %v879
        %v912 = vpack.c.bf16 %v881, %v880
        %v913 = vpack.c.bf16 %v883, %v882
        %v914 = vpack.c.bf16 %v885, %v884
        %v915 = vpack.c.bf16 %v887, %v886
        %v916 = vpack.c.bf16 %v889, %v888
        %v917 = vpack.c.bf16 %v891, %v890
        %v918 = vpack.c.bf16 %v893, %v892
        %v919 = vpack.c.bf16 %v895, %v894
        %v920 = vpack.c.bf16 %v897, %v896
        %v921 = vpack.c.bf16 %v899, %v898
        %v922 = vpack.c.bf16 %v901, %v900
        %v923 = vpack.c.bf16 %v903, %v902
        %v924 = vpack.c.bf16 %v905, %v904
        %v925 = vpack.c.bf16 %v907, %v906
        %v926 = vpack.c.bf16 %v909, %v908
        %v927 = vpack.c.bf16 %v911, %v910
        %v928 = vld [vmem:[#allocation8] sm:$0xf]
        %v929 = vld [vmem:[#allocation8 + $0x4] sm:$0xf]
        %v930 = vld [vmem:[#allocation8 + $0x8] sm:$0xf]
        %v931 = vld [vmem:[#allocation8 + $0xc] sm:$0xf]
        %v932 = vld [vmem:[#allocation8 + $0x10] sm:$0xf]
        %v933 = vld [vmem:[#allocation8 + $0x14] sm:$0xf]
        %v934 = vld [vmem:[#allocation8 + $0x18] sm:$0xf]
        %v935 = vld [vmem:[#allocation8 + $0x1c] sm:$0xf]
        %v936 = vld [vmem:[#allocation8 + $0x20] sm:$0xf]
        %v937 = vld [vmem:[#allocation8 + $0x24] sm:$0xf]
        %v938 = vld [vmem:[#allocation8 + $0x28] sm:$0xf]
        %v939 = vld [vmem:[#allocation8 + $0x2c] sm:$0xf]
        %v940 = vld [vmem:[#allocation8 + $0x30] sm:$0xf]
        %v941 = vld [vmem:[#allocation8 + $0x34] sm:$0xf]
        %v942 = vld [vmem:[#allocation8 + $0x38] sm:$0xf]
        %v943 = vld [vmem:[#allocation8 + $0x3c] sm:$0xf]
        %v960 = vunpack.c.l.b16 %v928
        %v961 = vunpack.c.l.b16 %v929
        %v962 = vunpack.c.l.b16 %v930
        %v963 = vunpack.c.l.b16 %v931
        %v964 = vunpack.c.l.b16 %v932
        %v965 = vunpack.c.l.b16 %v933
        %v966 = vunpack.c.l.b16 %v934
        %v967 = vunpack.c.l.b16 %v935
        %v968 = vunpack.c.l.b16 %v936
        %v969 = vunpack.c.l.b16 %v937
        %v970 = vunpack.c.l.b16 %v938
        %v971 = vunpack.c.l.b16 %v939
        %v972 = vunpack.c.l.b16 %v940
        %v973 = vunpack.c.l.b16 %v941
        %v974 = vunpack.c.l.b16 %v942
        %v975 = vunpack.c.l.b16 %v943
        %v976 = vpack.c.b16 %v961, %v960
        %v977 = vpack.c.b16 %v963, %v962
        %v978 = vpack.c.b16 %v965, %v964
        %v979 = vpack.c.b16 %v967, %v966
        %v980 = vpack.c.b16 %v969, %v968
        %v981 = vpack.c.b16 %v971, %v970
        %v982 = vpack.c.b16 %v973, %v972
        %v983 = vpack.c.b16 %v975, %v974
        %992 = vmatpush.bf16.msra.mxu0 %v983
        %993 = vmatpush.bf16.msra.mxu0 %v982
        %994 = vmatpush.bf16.msra.mxu0 %v981
        %995 = vmatpush.bf16.msra.mxu0 %v980
        %996 = vmatpush.bf16.msra.mxu0 %v979
        %997 = vmatpush.bf16.msra.mxu0 %v978
        %998 = vmatpush.bf16.msra.mxu0 %v977
        %999 = vmatpush.bf16.msra.mxu0 %v976
        %1000 = vmatmul.bf16.gmra.mxu0 %v912
        %v1001 = vpop.f32.mrf.mxu0
        %v1002 = vadd.f32 0.0, %v1001
        %v1003 = vpop.f32.mrf.mxu0
        %v1004 = vadd.f32 0.0, %v1003
        %1005 = vmatmul.bf16.gmra.mxu0 %v913
        %v1006 = vpop.f32.mrf.mxu0
        %v1007 = vadd.f32 0.0, %v1006
        %v1008 = vpop.f32.mrf.mxu0
        %v1009 = vadd.f32 0.0, %v1008
        %1010 = vmatmul.bf16.gmra.mxu0 %v914
        %v1011 = vpop.f32.mrf.mxu0
        %v1012 = vadd.f32 0.0, %v1011
        %v1013 = vpop.f32.mrf.mxu0
        %v1014 = vadd.f32 0.0, %v1013
        %1015 = vmatmul.bf16.gmra.mxu0 %v915
        %v1016 = vpop.f32.mrf.mxu0
        %v1017 = vadd.f32 0.0, %v1016
        %v1018 = vpop.f32.mrf.mxu0
        %v1019 = vadd.f32 0.0, %v1018
        %1020 = vmatmul.bf16.gmra.mxu0 %v916
        %v1021 = vpop.f32.mrf.mxu0
        %v1022 = vadd.f32 0.0, %v1021
        %v1023 = vpop.f32.mrf.mxu0
        %v1024 = vadd.f32 0.0, %v1023
        %1025 = vmatmul.bf16.gmra.mxu0 %v917
        %v1026 = vpop.f32.mrf.mxu0
        %v1027 = vadd.f32 0.0, %v1026
        %v1028 = vpop.f32.mrf.mxu0
        %v1029 = vadd.f32 0.0, %v1028
        %1030 = vmatmul.bf16.gmra.mxu0 %v918
        %v1031 = vpop.f32.mrf.mxu0
        %v1032 = vadd.f32 0.0, %v1031
        %v1033 = vpop.f32.mrf.mxu0
        %v1034 = vadd.f32 0.0, %v1033
        %1035 = vmatmul.bf16.gmra.mxu0 %v919
        %v1036 = vpop.f32.mrf.mxu0
        %v1037 = vadd.f32 0.0, %v1036
        %v1038 = vpop.f32.mrf.mxu0
        %v1039 = vadd.f32 0.0, %v1038
        %1040 = vmatmul.bf16.gmra.mxu0 %v920
        %v1041 = vpop.f32.mrf.mxu0
        %v1042 = vadd.f32 0.0, %v1041
        %v1043 = vpop.f32.mrf.mxu0
        %v1044 = vadd.f32 0.0, %v1043
        %1045 = vmatmul.bf16.gmra.mxu0 %v921
        %v1046 = vpop.f32.mrf.mxu0
        %v1047 = vadd.f32 0.0, %v1046
        %v1048 = vpop.f32.mrf.mxu0
        %v1049 = vadd.f32 0.0, %v1048
        %1050 = vmatmul.bf16.gmra.mxu0 %v922
        %v1051 = vpop.f32.mrf.mxu0
        %v1052 = vadd.f32 0.0, %v1051
        %v1053 = vpop.f32.mrf.mxu0
        %v1054 = vadd.f32 0.0, %v1053
        %1055 = vmatmul.bf16.gmra.mxu0 %v923
        %v1056 = vpop.f32.mrf.mxu0
        %v1057 = vadd.f32 0.0, %v1056
        %v1058 = vpop.f32.mrf.mxu0
        %v1059 = vadd.f32 0.0, %v1058
        %1060 = vmatmul.bf16.gmra.mxu0 %v924
        %v1061 = vpop.f32.mrf.mxu0
        %v1062 = vadd.f32 0.0, %v1061
        %v1063 = vpop.f32.mrf.mxu0
        %v1064 = vadd.f32 0.0, %v1063
        %1065 = vmatmul.bf16.gmra.mxu0 %v925
        %v1066 = vpop.f32.mrf.mxu0
        %v1067 = vadd.f32 0.0, %v1066
        %v1068 = vpop.f32.mrf.mxu0
        %v1069 = vadd.f32 0.0, %v1068
        %1070 = vmatmul.bf16.gmra.mxu0 %v926
        %v1071 = vpop.f32.mrf.mxu0
        %v1072 = vadd.f32 0.0, %v1071
        %v1073 = vpop.f32.mrf.mxu0
        %v1074 = vadd.f32 0.0, %v1073
        %1075 = vmatmul.bf16.gmra.mxu0 %v927
        %v1076 = vpop.f32.mrf.mxu0
        %v1077 = vadd.f32 0.0, %v1076
        %v1078 = vpop.f32.mrf.mxu0
        %v1079 = vadd.f32 0.0, %v1078
        %1080 = vdwg.mxu0
        %v1081 = vxor.u32 %v1002, 2147483648
        %v1082 = vxor.u32 %v1004, 2147483648
        %v1083 = vxor.u32 %v1007, 2147483648
        %v1084 = vxor.u32 %v1009, 2147483648
        %v1085 = vxor.u32 %v1012, 2147483648
        %v1086 = vxor.u32 %v1014, 2147483648
        %v1087 = vxor.u32 %v1017, 2147483648
        %v1088 = vxor.u32 %v1019, 2147483648
        %v1089 = vxor.u32 %v1022, 2147483648
        %v1090 = vxor.u32 %v1024, 2147483648
        %v1091 = vxor.u32 %v1027, 2147483648
        %v1092 = vxor.u32 %v1029, 2147483648
        %v1093 = vxor.u32 %v1032, 2147483648
        %v1094 = vxor.u32 %v1034, 2147483648
        %v1095 = vxor.u32 %v1037, 2147483648
        %v1096 = vxor.u32 %v1039, 2147483648
        %v1097 = vxor.u32 %v1042, 2147483648
        %v1098 = vxor.u32 %v1044, 2147483648
        %v1099 = vxor.u32 %v1047, 2147483648
        %v1100 = vxor.u32 %v1049, 2147483648
        %v1101 = vxor.u32 %v1052, 2147483648
        %v1102 = vxor.u32 %v1054, 2147483648
        %v1103 = vxor.u32 %v1057, 2147483648
        %v1104 = vxor.u32 %v1059, 2147483648
        %v1105 = vxor.u32 %v1062, 2147483648
        %v1106 = vxor.u32 %v1064, 2147483648
        %v1107 = vxor.u32 %v1067, 2147483648
        %v1108 = vxor.u32 %v1069, 2147483648
        %v1109 = vxor.u32 %v1072, 2147483648
        %v1110 = vxor.u32 %v1074, 2147483648
        %v1111 = vxor.u32 %v1077, 2147483648
        %v1112 = vxor.u32 %v1079, 2147483648
        %v1113 = vmul.f32 %v1081, 1.442695
        %v1114 = vpow.pop %v1113
        %v1115 = vmul.f32 %v1082, 1.442695
        %v1116 = vpow.pop %v1115
        %v1117 = vmul.f32 %v1083, 1.442695
        %v1118 = vpow.pop %v1117
        %v1119 = vmul.f32 %v1084, 1.442695
        %v1120 = vpow.pop %v1119
        %v1121 = vmul.f32 %v1085, 1.442695
        %v1122 = vpow.pop %v1121
        %v1123 = vmul.f32 %v1086, 1.442695
        %v1124 = vpow.pop %v1123
        %v1125 = vmul.f32 %v1087, 1.442695
        %v1126 = vpow.pop %v1125
        %v1127 = vmul.f32 %v1088, 1.442695
        %v1128 = vpow.pop %v1127
        %v1129 = vmul.f32 %v1089, 1.442695
        %v1130 = vpow.pop %v1129
        %v1131 = vmul.f32 %v1090, 1.442695
        %v1132 = vpow.pop %v1131
        %v1133 = vmul.f32 %v1091, 1.442695
        %v1134 = vpow.pop %v1133
        %v1135 = vmul.f32 %v1092, 1.442695
        %v1136 = vpow.pop %v1135
        %v1137 = vmul.f32 %v1093, 1.442695
        %v1138 = vpow.pop %v1137
        %v1139 = vmul.f32 %v1094, 1.442695
        %v1140 = vpow.pop %v1139
        %v1141 = vmul.f32 %v1095, 1.442695
        %v1142 = vpow.pop %v1141
        %v1143 = vmul.f32 %v1096, 1.442695
        %v1144 = vpow.pop %v1143
        %v1145 = vmul.f32 %v1097, 1.442695
        %v1146 = vpow.pop %v1145
        %v1147 = vmul.f32 %v1098, 1.442695
        %v1148 = vpow.pop %v1147
        %v1149 = vmul.f32 %v1099, 1.442695
        %v1150 = vpow.pop %v1149
        %v1151 = vmul.f32 %v1100, 1.442695
        %v1152 = vpow.pop %v1151
        %v1153 = vmul.f32 %v1101, 1.442695
        %v1154 = vpow.pop %v1153
        %v1155 = vmul.f32 %v1102, 1.442695
        %v1156 = vpow.pop %v1155
        %v1157 = vmul.f32 %v1103, 1.442695
        %v1158 = vpow.pop %v1157
        %v1159 = vmul.f32 %v1104, 1.442695
        %v1160 = vpow.pop %v1159
        %v1161 = vmul.f32 %v1105, 1.442695
        %v1162 = vpow.pop %v1161
        %v1163 = vmul.f32 %v1106, 1.442695
        %v1164 = vpow.pop %v1163
        %v1165 = vmul.f32 %v1107, 1.442695
        %v1166 = vpow.pop %v1165
        %v1167 = vmul.f32 %v1108, 1.442695
        %v1168 = vpow.pop %v1167
        %v1169 = vmul.f32 %v1109, 1.442695
        %v1170 = vpow.pop %v1169
        %v1171 = vmul.f32 %v1110, 1.442695
        %v1172 = vpow.pop %v1171
        %v1173 = vmul.f32 %v1111, 1.442695
        %v1174 = vpow.pop %v1173
        %v1175 = vmul.f32 %v1112, 1.442695
        %v1176 = vpow.pop %v1175
        %v1177 = vadd.f32 %v1114, 1.0
        %v1178 = vadd.f32 %v1116, 1.0
        %v1179 = vadd.f32 %v1118, 1.0
        %v1180 = vadd.f32 %v1120, 1.0
        %v1181 = vadd.f32 %v1122, 1.0
        %v1182 = vadd.f32 %v1124, 1.0
        %v1183 = vadd.f32 %v1126, 1.0
        %v1184 = vadd.f32 %v1128, 1.0
        %v1185 = vadd.f32 %v1130, 1.0
        %v1186 = vadd.f32 %v1132, 1.0
        %v1187 = vadd.f32 %v1134, 1.0
        %v1188 = vadd.f32 %v1136, 1.0
        %v1189 = vadd.f32 %v1138, 1.0
        %v1190 = vadd.f32 %v1140, 1.0
        %v1191 = vadd.f32 %v1142, 1.0
        %v1192 = vadd.f32 %v1144, 1.0
        %v1193 = vadd.f32 %v1146, 1.0
        %v1194 = vadd.f32 %v1148, 1.0
        %v1195 = vadd.f32 %v1150, 1.0
        %v1196 = vadd.f32 %v1152, 1.0
        %v1197 = vadd.f32 %v1154, 1.0
        %v1198 = vadd.f32 %v1156, 1.0
        %v1199 = vadd.f32 %v1158, 1.0
        %v1200 = vadd.f32 %v1160, 1.0
        %v1201 = vadd.f32 %v1162, 1.0
        %v1202 = vadd.f32 %v1164, 1.0
        %v1203 = vadd.f32 %v1166, 1.0
        %v1204 = vadd.f32 %v1168, 1.0
        %v1205 = vadd.f32 %v1170, 1.0
        %v1206 = vadd.f32 %v1172, 1.0
        %v1207 = vadd.f32 %v1174, 1.0
        %v1208 = vadd.f32 %v1176, 1.0
        %v1209 = vrcp.pop %v1177
        %v1210 = vmul.f32 %v1177, %v1209
        %v1211 = vsub.f32 1.0, %v1210
        %v1212 = vmul.f32 %v1209, %v1211
        %v1213 = vadd.f32 %v1209, %v1212
        %vm1214 = vweird.f32 %v1177
        %vm1215 = vweird.f32 %v1209
        %vm1216 = vmor %vm1214, %vm1215
        %v1217 = vsel %vm1216, %v1209, %v1213
        %v1218 = vand.u32 2147483647, %v1177
        %vm1219 = vcmp.eq.f32.partialorder %v1218, 8.507059e+37
        %v1220 = vand.u32 %v1177, 2147483648
        %v1221 = vor.u32 1.1754944e-38, %v1220
        %v1222 = vsel %vm1219, %v1221, %v1217
        %v1223 = vmul.f32 1.0, %v1222
        %v1224 = vrcp.pop %v1178
        %v1225 = vmul.f32 %v1178, %v1224
        %v1226 = vsub.f32 1.0, %v1225
        %v1227 = vmul.f32 %v1224, %v1226
        %v1228 = vadd.f32 %v1224, %v1227
        %vm1229 = vweird.f32 %v1178
        %vm1230 = vweird.f32 %v1224
        %vm1231 = vmor %vm1229, %vm1230
        %v1232 = vsel %vm1231, %v1224, %v1228
        %v1233 = vand.u32 2147483647, %v1178
        %vm1234 = vcmp.eq.f32.partialorder %v1233, 8.507059e+37
        %v1235 = vand.u32 %v1178, 2147483648
        %v1236 = vor.u32 1.1754944e-38, %v1235
        %v1237 = vsel %vm1234, %v1236, %v1232
        %v1238 = vmul.f32 1.0, %v1237
        %v1239 = vrcp.pop %v1179
        %v1240 = vmul.f32 %v1179, %v1239
        %v1241 = vsub.f32 1.0, %v1240
        %v1242 = vmul.f32 %v1239, %v1241
        %v1243 = vadd.f32 %v1239, %v1242
        %vm1244 = vweird.f32 %v1179
        %vm1245 = vweird.f32 %v1239
        %vm1246 = vmor %vm1244, %vm1245
        %v1247 = vsel %vm1246, %v1239, %v1243
        %v1248 = vand.u32 2147483647, %v1179
        %vm1249 = vcmp.eq.f32.partialorder %v1248, 8.507059e+37
        %v1250 = vand.u32 %v1179, 2147483648
        %v1251 = vor.u32 1.1754944e-38, %v1250
        %v1252 = vsel %vm1249, %v1251, %v1247
        %v1253 = vmul.f32 1.0, %v1252
        %v1254 = vrcp.pop %v1180
        %v1255 = vmul.f32 %v1180, %v1254
        %v1256 = vsub.f32 1.0, %v1255
        %v1257 = vmul.f32 %v1254, %v1256
        %v1258 = vadd.f32 %v1254, %v1257
        %vm1259 = vweird.f32 %v1180
        %vm1260 = vweird.f32 %v1254
        %vm1261 = vmor %vm1259, %vm1260
        %v1262 = vsel %vm1261, %v1254, %v1258
        %v1263 = vand.u32 2147483647, %v1180
        %vm1264 = vcmp.eq.f32.partialorder %v1263, 8.507059e+37
        %v1265 = vand.u32 %v1180, 2147483648
        %v1266 = vor.u32 1.1754944e-38, %v1265
        %v1267 = vsel %vm1264, %v1266, %v1262
        %v1268 = vmul.f32 1.0, %v1267
        %v1269 = vrcp.pop %v1181
        %v1270 = vmul.f32 %v1181, %v1269
        %v1271 = vsub.f32 1.0, %v1270
        %v1272 = vmul.f32 %v1269, %v1271
        %v1273 = vadd.f32 %v1269, %v1272
        %vm1274 = vweird.f32 %v1181
        %vm1275 = vweird.f32 %v1269
        %vm1276 = vmor %vm1274, %vm1275
        %v1277 = vsel %vm1276, %v1269, %v1273
        %v1278 = vand.u32 2147483647, %v1181
        %vm1279 = vcmp.eq.f32.partialorder %v1278, 8.507059e+37
        %v1280 = vand.u32 %v1181, 2147483648
        %v1281 = vor.u32 1.1754944e-38, %v1280
        %v1282 = vsel %vm1279, %v1281, %v1277
        %v1283 = vmul.f32 1.0, %v1282
        %v1284 = vrcp.pop %v1182
        %v1285 = vmul.f32 %v1182, %v1284
        %v1286 = vsub.f32 1.0, %v1285
        %v1287 = vmul.f32 %v1284, %v1286
        %v1288 = vadd.f32 %v1284, %v1287
        %vm1289 = vweird.f32 %v1182
        %vm1290 = vweird.f32 %v1284
        %vm1291 = vmor %vm1289, %vm1290
        %v1292 = vsel %vm1291, %v1284, %v1288
        %v1293 = vand.u32 2147483647, %v1182
        %vm1294 = vcmp.eq.f32.partialorder %v1293, 8.507059e+37
        %v1295 = vand.u32 %v1182, 2147483648
        %v1296 = vor.u32 1.1754944e-38, %v1295
        %v1297 = vsel %vm1294, %v1296, %v1292
        %v1298 = vmul.f32 1.0, %v1297
        %v1299 = vrcp.pop %v1183
        %v1300 = vmul.f32 %v1183, %v1299
        %v1301 = vsub.f32 1.0, %v1300
        %v1302 = vmul.f32 %v1299, %v1301
        %v1303 = vadd.f32 %v1299, %v1302
        %vm1304 = vweird.f32 %v1183
        %vm1305 = vweird.f32 %v1299
        %vm1306 = vmor %vm1304, %vm1305
        %v1307 = vsel %vm1306, %v1299, %v1303
        %v1308 = vand.u32 2147483647, %v1183
        %vm1309 = vcmp.eq.f32.partialorder %v1308, 8.507059e+37
        %v1310 = vand.u32 %v1183, 2147483648
        %v1311 = vor.u32 1.1754944e-38, %v1310
        %v1312 = vsel %vm1309, %v1311, %v1307
        %v1313 = vmul.f32 1.0, %v1312
        %v1314 = vrcp.pop %v1184
        %v1315 = vmul.f32 %v1184, %v1314
        %v1316 = vsub.f32 1.0, %v1315
        %v1317 = vmul.f32 %v1314, %v1316
        %v1318 = vadd.f32 %v1314, %v1317
        %vm1319 = vweird.f32 %v1184
        %vm1320 = vweird.f32 %v1314
        %vm1321 = vmor %vm1319, %vm1320
        %v1322 = vsel %vm1321, %v1314, %v1318
        %v1323 = vand.u32 2147483647, %v1184
        %vm1324 = vcmp.eq.f32.partialorder %v1323, 8.507059e+37
        %v1325 = vand.u32 %v1184, 2147483648
        %v1326 = vor.u32 1.1754944e-38, %v1325
        %v1327 = vsel %vm1324, %v1326, %v1322
        %v1328 = vmul.f32 1.0, %v1327
        %v1329 = vrcp.pop %v1185
        %v1330 = vmul.f32 %v1185, %v1329
        %v1331 = vsub.f32 1.0, %v1330
        %v1332 = vmul.f32 %v1329, %v1331
        %v1333 = vadd.f32 %v1329, %v1332
        %vm1334 = vweird.f32 %v1185
        %vm1335 = vweird.f32 %v1329
        %vm1336 = vmor %vm1334, %vm1335
        %v1337 = vsel %vm1336, %v1329, %v1333
        %v1338 = vand.u32 2147483647, %v1185
        %vm1339 = vcmp.eq.f32.partialorder %v1338, 8.507059e+37
        %v1340 = vand.u32 %v1185, 2147483648
        %v1341 = vor.u32 1.1754944e-38, %v1340
        %v1342 = vsel %vm1339, %v1341, %v1337
        %v1343 = vmul.f32 1.0, %v1342
        %v1344 = vrcp.pop %v1186
        %v1345 = vmul.f32 %v1186, %v1344
        %v1346 = vsub.f32 1.0, %v1345
        %v1347 = vmul.f32 %v1344, %v1346
        %v1348 = vadd.f32 %v1344, %v1347
        %vm1349 = vweird.f32 %v1186
        %vm1350 = vweird.f32 %v1344
        %vm1351 = vmor %vm1349, %vm1350
        %v1352 = vsel %vm1351, %v1344, %v1348
        %v1353 = vand.u32 2147483647, %v1186
        %vm1354 = vcmp.eq.f32.partialorder %v1353, 8.507059e+37
        %v1355 = vand.u32 %v1186, 2147483648
        %v1356 = vor.u32 1.1754944e-38, %v1355
        %v1357 = vsel %vm1354, %v1356, %v1352
        %v1358 = vmul.f32 1.0, %v1357
        %v1359 = vrcp.pop %v1187
        %v1360 = vmul.f32 %v1187, %v1359
        %v1361 = vsub.f32 1.0, %v1360
        %v1362 = vmul.f32 %v1359, %v1361
        %v1363 = vadd.f32 %v1359, %v1362
        %vm1364 = vweird.f32 %v1187
        %vm1365 = vweird.f32 %v1359
        %vm1366 = vmor %vm1364, %vm1365
        %v1367 = vsel %vm1366, %v1359, %v1363
        %v1368 = vand.u32 2147483647, %v1187
        %vm1369 = vcmp.eq.f32.partialorder %v1368, 8.507059e+37
        %v1370 = vand.u32 %v1187, 2147483648
        %v1371 = vor.u32 1.1754944e-38, %v1370
        %v1372 = vsel %vm1369, %v1371, %v1367
        %v1373 = vmul.f32 1.0, %v1372
        %v1374 = vrcp.pop %v1188
        %v1375 = vmul.f32 %v1188, %v1374
        %v1376 = vsub.f32 1.0, %v1375
        %v1377 = vmul.f32 %v1374, %v1376
        %v1378 = vadd.f32 %v1374, %v1377
        %vm1379 = vweird.f32 %v1188
        %vm1380 = vweird.f32 %v1374
        %vm1381 = vmor %vm1379, %vm1380
        %v1382 = vsel %vm1381, %v1374, %v1378
        %v1383 = vand.u32 2147483647, %v1188
        %vm1384 = vcmp.eq.f32.partialorder %v1383, 8.507059e+37
        %v1385 = vand.u32 %v1188, 2147483648
        %v1386 = vor.u32 1.1754944e-38, %v1385
        %v1387 = vsel %vm1384, %v1386, %v1382
        %v1388 = vmul.f32 1.0, %v1387
        %v1389 = vrcp.pop %v1189
        %v1390 = vmul.f32 %v1189, %v1389
        %v1391 = vsub.f32 1.0, %v1390
        %v1392 = vmul.f32 %v1389, %v1391
        %v1393 = vadd.f32 %v1389, %v1392
        %vm1394 = vweird.f32 %v1189
        %vm1395 = vweird.f32 %v1389
        %vm1396 = vmor %vm1394, %vm1395
        %v1397 = vsel %vm1396, %v1389, %v1393
        %v1398 = vand.u32 2147483647, %v1189
        %vm1399 = vcmp.eq.f32.partialorder %v1398, 8.507059e+37
        %v1400 = vand.u32 %v1189, 2147483648
        %v1401 = vor.u32 1.1754944e-38, %v1400
        %v1402 = vsel %vm1399, %v1401, %v1397
        %v1403 = vmul.f32 1.0, %v1402
        %v1404 = vrcp.pop %v1190
        %v1405 = vmul.f32 %v1190, %v1404
        %v1406 = vsub.f32 1.0, %v1405
        %v1407 = vmul.f32 %v1404, %v1406
        %v1408 = vadd.f32 %v1404, %v1407
        %vm1409 = vweird.f32 %v1190
        %vm1410 = vweird.f32 %v1404
        %vm1411 = vmor %vm1409, %vm1410
        %v1412 = vsel %vm1411, %v1404, %v1408
        %v1413 = vand.u32 2147483647, %v1190
        %vm1414 = vcmp.eq.f32.partialorder %v1413, 8.507059e+37
        %v1415 = vand.u32 %v1190, 2147483648
        %v1416 = vor.u32 1.1754944e-38, %v1415
        %v1417 = vsel %vm1414, %v1416, %v1412
        %v1418 = vmul.f32 1.0, %v1417
        %v1419 = vrcp.pop %v1191
        %v1420 = vmul.f32 %v1191, %v1419
        %v1421 = vsub.f32 1.0, %v1420
        %v1422 = vmul.f32 %v1419, %v1421
        %v1423 = vadd.f32 %v1419, %v1422
        %vm1424 = vweird.f32 %v1191
        %vm1425 = vweird.f32 %v1419
        %vm1426 = vmor %vm1424, %vm1425
        %v1427 = vsel %vm1426, %v1419, %v1423
        %v1428 = vand.u32 2147483647, %v1191
        %vm1429 = vcmp.eq.f32.partialorder %v1428, 8.507059e+37
        %v1430 = vand.u32 %v1191, 2147483648
        %v1431 = vor.u32 1.1754944e-38, %v1430
        %v1432 = vsel %vm1429, %v1431, %v1427
        %v1433 = vmul.f32 1.0, %v1432
        %v1434 = vrcp.pop %v1192
        %v1435 = vmul.f32 %v1192, %v1434
        %v1436 = vsub.f32 1.0, %v1435
        %v1437 = vmul.f32 %v1434, %v1436
        %v1438 = vadd.f32 %v1434, %v1437
        %vm1439 = vweird.f32 %v1192
        %vm1440 = vweird.f32 %v1434
        %vm1441 = vmor %vm1439, %vm1440
        %v1442 = vsel %vm1441, %v1434, %v1438
        %v1443 = vand.u32 2147483647, %v1192
        %vm1444 = vcmp.eq.f32.partialorder %v1443, 8.507059e+37
        %v1445 = vand.u32 %v1192, 2147483648
        %v1446 = vor.u32 1.1754944e-38, %v1445
        %v1447 = vsel %vm1444, %v1446, %v1442
        %v1448 = vmul.f32 1.0, %v1447
        %v1449 = vrcp.pop %v1193
        %v1450 = vmul.f32 %v1193, %v1449
        %v1451 = vsub.f32 1.0, %v1450
        %v1452 = vmul.f32 %v1449, %v1451
        %v1453 = vadd.f32 %v1449, %v1452
        %vm1454 = vweird.f32 %v1193
        %vm1455 = vweird.f32 %v1449
        %vm1456 = vmor %vm1454, %vm1455
        %v1457 = vsel %vm1456, %v1449, %v1453
        %v1458 = vand.u32 2147483647, %v1193
        %vm1459 = vcmp.eq.f32.partialorder %v1458, 8.507059e+37
        %v1460 = vand.u32 %v1193, 2147483648
        %v1461 = vor.u32 1.1754944e-38, %v1460
        %v1462 = vsel %vm1459, %v1461, %v1457
        %v1463 = vmul.f32 1.0, %v1462
        %v1464 = vrcp.pop %v1194
        %v1465 = vmul.f32 %v1194, %v1464
        %v1466 = vsub.f32 1.0, %v1465
        %v1467 = vmul.f32 %v1464, %v1466
        %v1468 = vadd.f32 %v1464, %v1467
        %vm1469 = vweird.f32 %v1194
        %vm1470 = vweird.f32 %v1464
        %vm1471 = vmor %vm1469, %vm1470
        %v1472 = vsel %vm1471, %v1464, %v1468
        %v1473 = vand.u32 2147483647, %v1194
        %vm1474 = vcmp.eq.f32.partialorder %v1473, 8.507059e+37
        %v1475 = vand.u32 %v1194, 2147483648
        %v1476 = vor.u32 1.1754944e-38, %v1475
        %v1477 = vsel %vm1474, %v1476, %v1472
        %v1478 = vmul.f32 1.0, %v1477
        %v1479 = vrcp.pop %v1195
        %v1480 = vmul.f32 %v1195, %v1479
        %v1481 = vsub.f32 1.0, %v1480
        %v1482 = vmul.f32 %v1479, %v1481
        %v1483 = vadd.f32 %v1479, %v1482
        %vm1484 = vweird.f32 %v1195
        %vm1485 = vweird.f32 %v1479
        %vm1486 = vmor %vm1484, %vm1485
        %v1487 = vsel %vm1486, %v1479, %v1483
        %v1488 = vand.u32 2147483647, %v1195
        %vm1489 = vcmp.eq.f32.partialorder %v1488, 8.507059e+37
        %v1490 = vand.u32 %v1195, 2147483648
        %v1491 = vor.u32 1.1754944e-38, %v1490
        %v1492 = vsel %vm1489, %v1491, %v1487
        %v1493 = vmul.f32 1.0, %v1492
        %v1494 = vrcp.pop %v1196
        %v1495 = vmul.f32 %v1196, %v1494
        %v1496 = vsub.f32 1.0, %v1495
        %v1497 = vmul.f32 %v1494, %v1496
        %v1498 = vadd.f32 %v1494, %v1497
        %vm1499 = vweird.f32 %v1196
        %vm1500 = vweird.f32 %v1494
        %vm1501 = vmor %vm1499, %vm1500
        %v1502 = vsel %vm1501, %v1494, %v1498
        %v1503 = vand.u32 2147483647, %v1196
        %vm1504 = vcmp.eq.f32.partialorder %v1503, 8.507059e+37
        %v1505 = vand.u32 %v1196, 2147483648
        %v1506 = vor.u32 1.1754944e-38, %v1505
        %v1507 = vsel %vm1504, %v1506, %v1502
        %v1508 = vmul.f32 1.0, %v1507
        %v1509 = vrcp.pop %v1197
        %v1510 = vmul.f32 %v1197, %v1509
        %v1511 = vsub.f32 1.0, %v1510
        %v1512 = vmul.f32 %v1509, %v1511
        %v1513 = vadd.f32 %v1509, %v1512
        %vm1514 = vweird.f32 %v1197
        %vm1515 = vweird.f32 %v1509
        %vm1516 = vmor %vm1514, %vm1515
        %v1517 = vsel %vm1516, %v1509, %v1513
        %v1518 = vand.u32 2147483647, %v1197
        %vm1519 = vcmp.eq.f32.partialorder %v1518, 8.507059e+37
        %v1520 = vand.u32 %v1197, 2147483648
        %v1521 = vor.u32 1.1754944e-38, %v1520
        %v1522 = vsel %vm1519, %v1521, %v1517
        %v1523 = vmul.f32 1.0, %v1522
        %v1524 = vrcp.pop %v1198
        %v1525 = vmul.f32 %v1198, %v1524
        %v1526 = vsub.f32 1.0, %v1525
        %v1527 = vmul.f32 %v1524, %v1526
        %v1528 = vadd.f32 %v1524, %v1527
        %vm1529 = vweird.f32 %v1198
        %vm1530 = vweird.f32 %v1524
        %vm1531 = vmor %vm1529, %vm1530
        %v1532 = vsel %vm1531, %v1524, %v1528
        %v1533 = vand.u32 2147483647, %v1198
        %vm1534 = vcmp.eq.f32.partialorder %v1533, 8.507059e+37
        %v1535 = vand.u32 %v1198, 2147483648
        %v1536 = vor.u32 1.1754944e-38, %v1535
        %v1537 = vsel %vm1534, %v1536, %v1532
        %v1538 = vmul.f32 1.0, %v1537
        %v1539 = vrcp.pop %v1199
        %v1540 = vmul.f32 %v1199, %v1539
        %v1541 = vsub.f32 1.0, %v1540
        %v1542 = vmul.f32 %v1539, %v1541
        %v1543 = vadd.f32 %v1539, %v1542
        %vm1544 = vweird.f32 %v1199
        %vm1545 = vweird.f32 %v1539
        %vm1546 = vmor %vm1544, %vm1545
        %v1547 = vsel %vm1546, %v1539, %v1543
        %v1548 = vand.u32 2147483647, %v1199
        %vm1549 = vcmp.eq.f32.partialorder %v1548, 8.507059e+37
        %v1550 = vand.u32 %v1199, 2147483648
        %v1551 = vor.u32 1.1754944e-38, %v1550
        %v1552 = vsel %vm1549, %v1551, %v1547
        %v1553 = vmul.f32 1.0, %v1552
        %v1554 = vrcp.pop %v1200
        %v1555 = vmul.f32 %v1200, %v1554
        %v1556 = vsub.f32 1.0, %v1555
        %v1557 = vmul.f32 %v1554, %v1556
        %v1558 = vadd.f32 %v1554, %v1557
        %vm1559 = vweird.f32 %v1200
        %vm1560 = vweird.f32 %v1554
        %vm1561 = vmor %vm1559, %vm1560
        %v1562 = vsel %vm1561, %v1554, %v1558
        %v1563 = vand.u32 2147483647, %v1200
        %vm1564 = vcmp.eq.f32.partialorder %v1563, 8.507059e+37
        %v1565 = vand.u32 %v1200, 2147483648
        %v1566 = vor.u32 1.1754944e-38, %v1565
        %v1567 = vsel %vm1564, %v1566, %v1562
        %v1568 = vmul.f32 1.0, %v1567
        %v1569 = vrcp.pop %v1201
        %v1570 = vmul.f32 %v1201, %v1569
        %v1571 = vsub.f32 1.0, %v1570
        %v1572 = vmul.f32 %v1569, %v1571
        %v1573 = vadd.f32 %v1569, %v1572
        %vm1574 = vweird.f32 %v1201
        %vm1575 = vweird.f32 %v1569
        %vm1576 = vmor %vm1574, %vm1575
        %v1577 = vsel %vm1576, %v1569, %v1573
        %v1578 = vand.u32 2147483647, %v1201
        %vm1579 = vcmp.eq.f32.partialorder %v1578, 8.507059e+37
        %v1580 = vand.u32 %v1201, 2147483648
        %v1581 = vor.u32 1.1754944e-38, %v1580
        %v1582 = vsel %vm1579, %v1581, %v1577
        %v1583 = vmul.f32 1.0, %v1582
        %v1584 = vrcp.pop %v1202
        %v1585 = vmul.f32 %v1202, %v1584
        %v1586 = vsub.f32 1.0, %v1585
        %v1587 = vmul.f32 %v1584, %v1586
        %v1588 = vadd.f32 %v1584, %v1587
        %vm1589 = vweird.f32 %v1202
        %vm1590 = vweird.f32 %v1584
        %vm1591 = vmor %vm1589, %vm1590
        %v1592 = vsel %vm1591, %v1584, %v1588
        %v1593 = vand.u32 2147483647, %v1202
        %vm1594 = vcmp.eq.f32.partialorder %v1593, 8.507059e+37
        %v1595 = vand.u32 %v1202, 2147483648
        %v1596 = vor.u32 1.1754944e-38, %v1595
        %v1597 = vsel %vm1594, %v1596, %v1592
        %v1598 = vmul.f32 1.0, %v1597
        %v1599 = vrcp.pop %v1203
        %v1600 = vmul.f32 %v1203, %v1599
        %v1601 = vsub.f32 1.0, %v1600
        %v1602 = vmul.f32 %v1599, %v1601
        %v1603 = vadd.f32 %v1599, %v1602
        %vm1604 = vweird.f32 %v1203
        %vm1605 = vweird.f32 %v1599
        %vm1606 = vmor %vm1604, %vm1605
        %v1607 = vsel %vm1606, %v1599, %v1603
        %v1608 = vand.u32 2147483647, %v1203
        %vm1609 = vcmp.eq.f32.partialorder %v1608, 8.507059e+37
        %v1610 = vand.u32 %v1203, 2147483648
        %v1611 = vor.u32 1.1754944e-38, %v1610
        %v1612 = vsel %vm1609, %v1611, %v1607
        %v1613 = vmul.f32 1.0, %v1612
        %v1614 = vrcp.pop %v1204
        %v1615 = vmul.f32 %v1204, %v1614
        %v1616 = vsub.f32 1.0, %v1615
        %v1617 = vmul.f32 %v1614, %v1616
        %v1618 = vadd.f32 %v1614, %v1617
        %vm1619 = vweird.f32 %v1204
        %vm1620 = vweird.f32 %v1614
        %vm1621 = vmor %vm1619, %vm1620
        %v1622 = vsel %vm1621, %v1614, %v1618
        %v1623 = vand.u32 2147483647, %v1204
        %vm1624 = vcmp.eq.f32.partialorder %v1623, 8.507059e+37
        %v1625 = vand.u32 %v1204, 2147483648
        %v1626 = vor.u32 1.1754944e-38, %v1625
        %v1627 = vsel %vm1624, %v1626, %v1622
        %v1628 = vmul.f32 1.0, %v1627
        %v1629 = vrcp.pop %v1205
        %v1630 = vmul.f32 %v1205, %v1629
        %v1631 = vsub.f32 1.0, %v1630
        %v1632 = vmul.f32 %v1629, %v1631
        %v1633 = vadd.f32 %v1629, %v1632
        %vm1634 = vweird.f32 %v1205
        %vm1635 = vweird.f32 %v1629
        %vm1636 = vmor %vm1634, %vm1635
        %v1637 = vsel %vm1636, %v1629, %v1633
        %v1638 = vand.u32 2147483647, %v1205
        %vm1639 = vcmp.eq.f32.partialorder %v1638, 8.507059e+37
        %v1640 = vand.u32 %v1205, 2147483648
        %v1641 = vor.u32 1.1754944e-38, %v1640
        %v1642 = vsel %vm1639, %v1641, %v1637
        %v1643 = vmul.f32 1.0, %v1642
        %v1644 = vrcp.pop %v1206
        %v1645 = vmul.f32 %v1206, %v1644
        %v1646 = vsub.f32 1.0, %v1645
        %v1647 = vmul.f32 %v1644, %v1646
        %v1648 = vadd.f32 %v1644, %v1647
        %vm1649 = vweird.f32 %v1206
        %vm1650 = vweird.f32 %v1644
        %vm1651 = vmor %vm1649, %vm1650
        %v1652 = vsel %vm1651, %v1644, %v1648
        %v1653 = vand.u32 2147483647, %v1206
        %vm1654 = vcmp.eq.f32.partialorder %v1653, 8.507059e+37
        %v1655 = vand.u32 %v1206, 2147483648
        %v1656 = vor.u32 1.1754944e-38, %v1655
        %v1657 = vsel %vm1654, %v1656, %v1652
        %v1658 = vmul.f32 1.0, %v1657
        %v1659 = vrcp.pop %v1207
        %v1660 = vmul.f32 %v1207, %v1659
        %v1661 = vsub.f32 1.0, %v1660
        %v1662 = vmul.f32 %v1659, %v1661
        %v1663 = vadd.f32 %v1659, %v1662
        %vm1664 = vweird.f32 %v1207
        %vm1665 = vweird.f32 %v1659
        %vm1666 = vmor %vm1664, %vm1665
        %v1667 = vsel %vm1666, %v1659, %v1663
        %v1668 = vand.u32 2147483647, %v1207
        %vm1669 = vcmp.eq.f32.partialorder %v1668, 8.507059e+37
        %v1670 = vand.u32 %v1207, 2147483648
        %v1671 = vor.u32 1.1754944e-38, %v1670
        %v1672 = vsel %vm1669, %v1671, %v1667
        %v1673 = vmul.f32 1.0, %v1672
        %v1674 = vrcp.pop %v1208
        %v1675 = vmul.f32 %v1208, %v1674
        %v1676 = vsub.f32 1.0, %v1675
        %v1677 = vmul.f32 %v1674, %v1676
        %v1678 = vadd.f32 %v1674, %v1677
        %vm1679 = vweird.f32 %v1208
        %vm1680 = vweird.f32 %v1674
        %vm1681 = vmor %vm1679, %vm1680
        %v1682 = vsel %vm1681, %v1674, %v1678
        %v1683 = vand.u32 2147483647, %v1208
        %vm1684 = vcmp.eq.f32.partialorder %v1683, 8.507059e+37
        %v1685 = vand.u32 %v1208, 2147483648
        %v1686 = vor.u32 1.1754944e-38, %v1685
        %v1687 = vsel %vm1684, %v1686, %v1682
        %v1688 = vmul.f32 1.0, %v1687
        %1689 = vst [vmem:[%s267] sm:$0xff] %v1223
        %1690 = vst [vmem:[%s267 + $0x8] sm:$0xff] %v1238
        %1691 = vst [vmem:[%s267 + $0x10] sm:$0xff] %v1253
        %1692 = vst [vmem:[%s267 + $0x18] sm:$0xff] %v1268
        %1693 = vst [vmem:[%s267 + $0x20] sm:$0xff] %v1283
        %1694 = vst [vmem:[%s267 + $0x28] sm:$0xff] %v1298
        %1695 = vst [vmem:[%s267 + $0x30] sm:$0xff] %v1313
        %1696 = vst [vmem:[%s267 + $0x38] sm:$0xff] %v1328
        %1697 = vst [vmem:[%s267 + $0x40] sm:$0xff] %v1343
        %1698 = vst [vmem:[%s267 + $0x48] sm:$0xff] %v1358
        %1699 = vst [vmem:[%s267 + $0x50] sm:$0xff] %v1373
        %1700 = vst [vmem:[%s267 + $0x58] sm:$0xff] %v1388
        %1701 = vst [vmem:[%s267 + $0x60] sm:$0xff] %v1403
        %1702 = vst [vmem:[%s267 + $0x68] sm:$0xff] %v1418
        %1703 = vst [vmem:[%s267 + $0x70] sm:$0xff] %v1433
        %1704 = vst [vmem:[%s267 + $0x78] sm:$0xff] %v1448
        %1705 = vst [vmem:[%s267 + $0x80] sm:$0xff] %v1463
        %1706 = vst [vmem:[%s267 + $0x88] sm:$0xff] %v1478
        %1707 = vst [vmem:[%s267 + $0x90] sm:$0xff] %v1493
        %1708 = vst [vmem:[%s267 + $0x98] sm:$0xff] %v1508
        %1709 = vst [vmem:[%s267 + $0xa0] sm:$0xff] %v1523
        %1710 = vst [vmem:[%s267 + $0xa8] sm:$0xff] %v1538
        %1711 = vst [vmem:[%s267 + $0xb0] sm:$0xff] %v1553
        %1712 = vst [vmem:[%s267 + $0xb8] sm:$0xff] %v1568
        %1713 = vst [vmem:[%s267 + $0xc0] sm:$0xff] %v1583
        %1714 = vst [vmem:[%s267 + $0xc8] sm:$0xff] %v1598
        %1715 = vst [vmem:[%s267 + $0xd0] sm:$0xff] %v1613
        %1716 = vst [vmem:[%s267 + $0xd8] sm:$0xff] %v1628
        %1717 = vst [vmem:[%s267 + $0xe0] sm:$0xff] %v1643
        %1718 = vst [vmem:[%s267 + $0xe8] sm:$0xff] %v1658
        %1719 = vst [vmem:[%s267 + $0xf0] sm:$0xff] %v1673
        %1720 = vst [vmem:[%s267 + $0xf8] sm:$0xff] %v1688
        %s1721 = sand.u32 %s120, 1
        %s1722 = scalar_lea.sflag [#allocation4], %s1721
        %s1723 = sand.u32 %s120, 1
        %s1724 = smul.addr %s1723, 256
        %s1725 = scalar_lea.vmem [#allocation10], %s1724
        // Predicated region
        $region53: #{tpu_custom_call.1} parent=35 // pred_check
          %p1726 = pneg %p130
        $region54: #{tpu_custom_call.1} parent=35 // pred_check_branch
          %1728 = sbr.rel (%p1726) target = $region56
        $region55: #{tpu_custom_call.1} parent=35 // pred_region
          %s1729 = smul.u32 32, %s23
          %1731 = vsyncadd %s1722, 0
          %s1732 = smul.addr %s1729, 8
          %s1733 = scalar_lea.hbm %s4, %s1732
          %s1734 = sshll.u32 %s1725, 4
          %s1735 = int_to_ptr.vmem [resolvable:$true] %s1734
          %s1736 = sshll.u32 %s1733, 4
          %s1737 = int_to_ptr.hbm [resolvable:$true] %s1736
          %1742 = dma.vmem_to_hbm [thread:$0]  %s1735, 4096, %s1737, %s1722, 128, 128, 8
        $region56: #{tpu_custom_call.1} parent=35 // pred_fallthru
          _
      $region36: #{tpu_custom_call.1} parent=5 // pred_fallthru
        _
      %p1743 = scmp.le.s32.totalorder 2, %s18
      // Predicated region
      $region57: #{tpu_custom_call.1} parent=5 // pred_check
        %p1744 = pneg %p1743
      $region58: #{tpu_custom_call.1} parent=5 // pred_check_branch
        %1746 = sbr.rel (%p1744) target = $region60
      $region59: #{tpu_custom_call.1} parent=5 // pred_region
        %s1747 = ssub.s32 %s18, 2
        // Predicated region
        $region61: #{tpu_custom_call.1} parent=59 // pred_check
          %p1748 = pneg %p136
        $region62: #{tpu_custom_call.1} parent=59 // pred_check_branch
          %1750 = sbr.rel (%p1748) target = $region64
        $region63: #{tpu_custom_call.1} parent=59 // pred_region
          %s1751 = sand.u32 %s121, 1
          %s1752 = scalar_lea.sflag [#allocation4], %s1751
          %s1753 = sand.u32 %s121, 1
          %s1754 = smul.addr %s1753, 256
          %s1755 = scalar_lea.vmem [#allocation10], %s1754
          %1757 = dma.done %s1752, 4096
        $region64: #{tpu_custom_call.1} parent=59 // pred_fallthru
          _
      $region60: #{tpu_custom_call.1} parent=5 // pred_fallthru
        _
    $region6: #{tpu_custom_call.1} parent=1 // loop_footer
      %s22 = sadd.s32 1, %s18
    $region7: #{tpu_custom_call.1} parent=1 // loop_footer_branch
      %17 = sbr.rel target = $region3
    $region8: #{tpu_custom_call.1} parent=1 // loop_exit
      _
    %1758 = vsyncpa [#allocation3], 1
    %s1759 = scalar_lea.sflag [#allocation3], 1
    %1760 = vsyncpa %s1759, 1
    %1761 = vsyncpa [#allocation6], 1
    %1762 = vsyncpa [#allocation9], 1
    %1763 = vsyncpa [#allocation4], 1
    %s1764 = scalar_lea.sflag [#allocation4], 1
    %1765 = vsyncpa %s1764, 1

</llo_original>
